<compile_context>
chip_gen: v6e
topology: v6e:2x2x1
jax: 0.10.0
libtpu: 0.0.40
codegen_flags: <defaults>
</compile_context>

<pallas_src>
import math

import jax
import jax.numpy as jnp
from jax.experimental import pallas as pl
from jax.experimental.pallas import tpu as pltpu

STAGE_CFGS = [[6, 24, 2, 2], [6, 32, 3, 2], [6, 64, 4, 2],
              [6, 96, 3, 1], [6, 160, 3, 2], [6, 320, 1, 1]]
STEM_OUT_CHANNELS = 16      # `in_channels` before the stage loop in __init__
FINAL_CHANNELS = 1280
BN_EPS = 1e-5


def _round_up(a, b):
    return -(-a // b) * b


def _cdiv(a, b):
    return -(-a // b)


def _count_identity_blocks():
    """Replicates the block-construction loop in MobileNetV2.__init__."""
    n_id = 0
    in_channels = STEM_OUT_CHANNELS
    for _expand, num_channels, num_blocks, stride in STAGE_CFGS:
        for block_idx in range(num_blocks):
            s = stride if block_idx == 0 else 1
            if s == 1 and in_channels == num_channels:
                n_id += 1                     # block returns x + x
            in_channels = num_channels
    # `in_channels` after the loop is the final_block conv input channel count.
    return n_id, in_channels


def _final_block_kernel(x_ref, w_ref, scale_ref, bias_ref, o_ref):
    """Fused 1x1-conv row tile (bf16 MXU matmul) * BN-affine (f32) + ReLU6.

    The 2**n_identity layers-scaling is pre-folded into scale_ref on the host
    (exact: power of two, linear ops), so there is no per-step rescaling.
    """
    acc = jnp.dot(x_ref[...], w_ref[...], preferred_element_type=jnp.float32)
    y = acc * scale_ref[...] + bias_ref[...]
    o_ref[...] = jnp.clip(y, 0.0, 6.0).astype(o_ref.dtype)


def init_params(key, in_ch=None, out_ch=FINAL_CHANNELS):
    """Deterministic parameter init mirroring MobileNetV2._initialize_weights."""
    if in_ch is None:
        _, in_ch = _count_identity_blocks()
    # Conv2d: n = kh*kw*out_channels; weight ~ N(0, sqrt(2/n)); no bias.
    n = 1 * 1 * out_ch
    std = math.sqrt(2.0 / n)
    w = jax.random.normal(key, (out_ch, in_ch, 1, 1), jnp.float32) * std  # OIHW
    # BatchNorm2d: weight=1, bias=0 (custom init); running stats = default 0/1.
    return {
        "w": w,
        "gamma": jnp.ones((out_ch,), jnp.float32),
        "beta": jnp.zeros((out_ch,), jnp.float32),
        "mean": jnp.zeros((out_ch,), jnp.float32),
        "var": jnp.ones((out_ch,), jnp.float32),
    }


def _choose_row_tiling(M, tm_max):
    """Row-tile size: multiple of 16 (bf16 sublane packing), >=2 tiles when
    possible (v7x megacore), padding bounded by ~16*num_tiles rows."""
    if M <= 16:
        return 16, 1
    num_tiles = max(2, _cdiv(M, tm_max))
    tm = _round_up(_cdiv(M, num_tiles), 16)
    num_tiles = _cdiv(M, tm)
    return tm, num_tiles


def mobilenetv2_forward(x, params, *, tm_max=1024,
                        matmul_dtype=jnp.bfloat16,
                        out_dtype=jnp.bfloat16,
                        data_format="NCHW",
                        vmem_limit_bytes=None):
    """Forward pass.  tm_max: row-tile cap (1024 safe on all generations;
    v6e may use up to ~4096 with vmem_limit_bytes, keep <=2048 on v7x)."""
    n_id, conv_in_ch = _count_identity_blocks()
    layer_scale = float(2 ** n_id)            # 2**10 = 1024

    if data_format == "NCHW":
        N, C, H, W = x.shape
        x_rows_src = jnp.transpose(x, (0, 2, 3, 1))
    elif data_format == "NHWC":
        N, H, W, C = x.shape
        x_rows_src = x
    else:
        raise ValueError(f"unknown data_format {data_format!r}")
    assert C == conv_in_ch, f"final_block expects {conv_in_ch} channels, got {C}"
    C_out = params["w"].shape[0]

    M = N * H * W
    tm, num_tiles = _choose_row_tiling(M, tm_max)
    M_pad = tm * num_tiles

    # --- glue: channels-last rows, bf16 matmul operand (fuses under jit) ---
    x2d = x_rows_src.reshape(M, C).astype(matmul_dtype)
    if M_pad != M:
        x2d = jnp.pad(x2d, ((0, M_pad - M), (0, 0)))   # at most ~16*num_tiles rows

    # Conv weight (O, I, 1, 1) -> (I, O) matmul weight in bf16.
    w2d = jnp.transpose(params["w"][:, :, 0, 0], (1, 0)).astype(matmul_dtype)

    # Fold BN (inference form) + layer_scale into per-channel scale/bias (f32).
    inv_std = 1.0 / jnp.sqrt(params["var"] + BN_EPS)
    bn_scale = (params["gamma"] * inv_std * layer_scale
                ).reshape(1, C_out).astype(jnp.float32)
    bn_bias = (params["beta"] - params["mean"] * params["gamma"] * inv_std
               ).reshape(1, C_out).astype(jnp.float32)

    in_bytes = jnp.dtype(matmul_dtype).itemsize
    out_bytes = jnp.dtype(out_dtype).itemsize
    cost = pl.CostEstimate(
        flops=2 * M_pad * C * C_out,
        transcendentals=0,
        bytes_accessed=(M_pad * C * in_bytes          # x rows, read once
                        + C * C_out * in_bytes        # weight, fetched once
                        + 2 * C_out * 4               # BN scale / bias
                        + M_pad * C_out * out_bytes)) # bf16 writeback

    out2d = pl.pallas_call(
        _final_block_kernel,
        out_shape=jax.ShapeDtypeStruct((M_pad, C_out), out_dtype),
        grid_spec=pltpu.PrefetchScalarGridSpec(
            num_scalar_prefetch=0,
            grid=(num_tiles,),                           # rows only; weight resident
            in_specs=[
                pl.BlockSpec((tm, C), lambda i: (i, 0)),      # row tile, full K
                pl.BlockSpec((C, C_out), lambda i: (0, 0)),   # full weight, constant idx
                pl.BlockSpec((1, C_out), lambda i: (0, 0)),   # BN scale (f32)
                pl.BlockSpec((1, C_out), lambda i: (0, 0)),   # BN bias (f32)
            ],
            out_specs=pl.BlockSpec((tm, C_out), lambda i: (i, 0)),
        ),
        compiler_params=pltpu.CompilerParams(
            dimension_semantics=("parallel",),
            vmem_limit_bytes=vmem_limit_bytes),
        cost_estimate=cost,
    )(x2d, w2d, bn_scale, bn_bias)

    # --- glue: rows -> requested layout (padded rows sliced off) ---
    out_rows = out2d[:M].reshape(N, H, W, C_out)
    if data_format == "NCHW":
        return jnp.transpose(out_rows, (0, 3, 1, 2))
    return out_rows


def _reference_forward(x_nchw, params, matmul_dtype=jnp.bfloat16):
    """Pure-JAX reference with the same bf16 operand quantization, f32 epilogue."""
    n_id, _ = _count_identity_blocks()
    xq = jnp.transpose(x_nchw, (0, 2, 3, 1)).astype(matmul_dtype)
    w = jnp.transpose(params["w"][:, :, 0, 0], (1, 0)).astype(matmul_dtype)
    acc = jnp.einsum("nhwc,cd->nhwd", xq, w, preferred_element_type=jnp.float32)
    inv_std = 1.0 / jnp.sqrt(params["var"] + BN_EPS)
    scale = params["gamma"] * inv_std * float(2 ** n_id)
    bias = params["beta"] - params["mean"] * params["gamma"] * inv_std
    y = jnp.clip(acc * scale + bias, 0.0, 6.0)
    return jnp.transpose(y, (0, 3, 1, 2))


if __name__ == "__main__":
    key = jax.random.PRNGKey(0)
    k_x, k_w = jax.random.split(key)

    _, conv_in_ch = _count_identity_blocks()   # = 320
    # Small but consistent input: every layer before final_block is identity,
    # so the input itself must carry 320 channels.  NCHW, float32.
    x = jax.random.normal(k_x, (2, conv_in_ch, 4, 4), dtype=jnp.float32)
    params = init_params(k_w, conv_in_ch, FINAL_CHANNELS)

    fwd = jax.jit(mobilenetv2_forward,
                  static_argnames=("tm_max", "matmul_dtype", "out_dtype",
                                   "data_format", "vmem_limit_bytes"))
    out = fwd(x, params)
    jax.block_until_ready(out)

    assert out.shape == (2, FINAL_CHANNELS, 4, 4), out.shape
    assert out.dtype == jnp.bfloat16, out.dtype
    outf = out.astype(jnp.float32)
    assert bool(jnp.all(outf >= 0.0)) and bool(jnp.all(outf <= 6.0))  # ReLU6 range

    ref = _reference_forward(x, params)
    max_err = float(jnp.max(jnp.abs(outf - ref)))
    assert max_err < 5e-2, f"mismatch vs reference: {max_err}"

    print("KERNEL_OK")
</pallas_src>

<mosaic_0001>
module attributes {stable_mosaic.version = 11 : i64} {
  func.func @_final_block_kernel(%arg0: i32, %arg1: memref<16x320xbf16, #tpu.memory_space<vmem>>, %arg2: memref<320x1280xbf16, #tpu.memory_space<vmem>>, %arg3: memref<1x1280xf32, #tpu.memory_space<vmem>>, %arg4: memref<1x1280xf32, #tpu.memory_space<vmem>>, %arg5: memref<16x1280xbf16, #tpu.memory_space<vmem>>) attributes {dimension_semantics = [#tpu.dimension_semantics<parallel>], iteration_bounds = array<i64: 2>, scalar_prefetch = 0 : i64, scratch_operands = 0 : i64, tpu.core_type = #tpu.core_type<tc>, window_params = [{transform_indices = @transform_0, window_bounds = array<i64: 16, 320>}, {pipeline_mode = #tpu.pipeline_mode<synchronous>, transform_indices = @transform_1, window_bounds = array<i64: 320, 1280>}, {pipeline_mode = #tpu.pipeline_mode<synchronous>, transform_indices = @transform_2, window_bounds = array<i64: 1, 1280>}, {pipeline_mode = #tpu.pipeline_mode<synchronous>, transform_indices = @transform_3, window_bounds = array<i64: 1, 1280>}, {transform_indices = @transform_4, window_bounds = array<i64: 16, 1280>}]} {
    %c0 = arith.constant 0 : index
    %c0_0 = arith.constant 0 : index
    %0 = vector.load %arg1[%c0, %c0_0] : memref<16x320xbf16, #tpu.memory_space<vmem>>, vector<16x320xbf16>
    %c0_1 = arith.constant 0 : index
    %c0_2 = arith.constant 0 : index
    %1 = vector.load %arg2[%c0_1, %c0_2] : memref<320x1280xbf16, #tpu.memory_space<vmem>>, vector<320x1280xbf16>
    %cst = arith.constant dense<0.000000e+00> : vector<16x1280xf32>
    %2 = tpu.matmul %0, %1, %cst {dimension_numbers = #tpu.dot_dimension_numbers<[1], [0], [0], [1], [0, 0, 1, 1], [], []>} : vector<16x320xbf16>, vector<320x1280xbf16>, vector<16x1280xf32> -> vector<16x1280xf32>
    %c0_3 = arith.constant 0 : index
    %c0_4 = arith.constant 0 : index
    %3 = vector.load %arg3[%c0_3, %c0_4] : memref<1x1280xf32, #tpu.memory_space<vmem>>, vector<1x1280xf32>
    %4 = vector.broadcast %3 : vector<1x1280xf32> to vector<16x1280xf32>
    %5 = arith.mulf %2, %4 : vector<16x1280xf32>
    %c0_5 = arith.constant 0 : index
    %c0_6 = arith.constant 0 : index
    %6 = vector.load %arg4[%c0_5, %c0_6] : memref<1x1280xf32, #tpu.memory_space<vmem>>, vector<1x1280xf32>
    %7 = vector.broadcast %6 : vector<1x1280xf32> to vector<16x1280xf32>
    %8 = arith.addf %5, %7 : vector<16x1280xf32>
    %cst_7 = arith.constant 0.000000e+00 : f32
    %cst_8 = arith.constant 6.000000e+00 : f32
    %9 = vector.broadcast %cst_7 : f32 to vector<16x1280xf32>
    %10 = arith.maximumf %9, %8 : vector<16x1280xf32>
    %11 = vector.broadcast %cst_8 : f32 to vector<16x1280xf32>
    %12 = arith.minimumf %11, %10 : vector<16x1280xf32>
    %13 = arith.truncf %12 : vector<16x1280xf32> to vector<16x1280xbf16>
    %c0_9 = arith.constant 0 : index
    %c0_10 = arith.constant 0 : index
    %14 = vector.load %arg5[%c0_9, %c0_10] : memref<16x1280xbf16, #tpu.memory_space<vmem>>, vector<16x1280xbf16>
    tpu.vector_store %arg5[%c0_9, %c0_10], %13 {strides = array<i32>} : memref<16x1280xbf16, #tpu.memory_space<vmem>>, vector<16x1280xbf16>,
    return
  }
  func.func @transform_0(%arg0: i32) -> (i32, i32) {
    %c0_i32 = arith.constant 0 : i32
    %c0_i32_0 = arith.constant 0 : i32
    return %arg0, %c0_i32 : i32, i32
  }
  func.func @transform_1(%arg0: i32) -> (i32, i32) {
    %c0_i32 = arith.constant 0 : i32
    %c0_i32_0 = arith.constant 0 : i32
    %c0_i32_1 = arith.constant 0 : i32
    return %c0_i32, %c0_i32_0 : i32, i32
  }
  func.func @transform_2(%arg0: i32) -> (i32, i32) {
    %c0_i32 = arith.constant 0 : i32
    %c0_i32_0 = arith.constant 0 : i32
    %c0_i32_1 = arith.constant 0 : i32
    return %c0_i32, %c0_i32_0 : i32, i32
  }
  func.func @transform_3(%arg0: i32) -> (i32, i32) {
    %c0_i32 = arith.constant 0 : i32
    %c0_i32_0 = arith.constant 0 : i32
    %c0_i32_1 = arith.constant 0 : i32
    return %c0_i32, %c0_i32_0 : i32, i32
  }
  func.func @transform_4(%arg0: i32) -> (i32, i32) {
    %c0_i32 = arith.constant 0 : i32
    %c0_i32_0 = arith.constant 0 : i32
    return %arg0, %c0_i32 : i32, i32
  }
}

</mosaic_0001>

<llo_original>
// kernel: mobilenetv2_forward.1
$region0: #{mobilenetv2_forward.1}
  #allocation0 [shape = 'u32[]', space=smem, size = 0x4, offset = 0x4, fixed_abs, tag = 'smem constant byte address 0x4 - core index']
  #allocation1 [shape = 'u32[144,128]{1,0:T(1,128)}', space=vmem, size = 0x12000, scoped, tag = 'internal scratch']
  %s0 = inlined_call_operand.vmem [shape: bf16[32,320], index: 0, kind: input, shape index: {}]
  %s1 = inlined_call_operand.vmem [shape: bf16[320,1280], index: 1, kind: input, shape index: {}]
  %s2 = inlined_call_operand.vmem [shape: f32[1,1280], index: 2, kind: input, shape index: {}]
  %s3 = inlined_call_operand.vmem [shape: f32[1,1280], index: 3, kind: input, shape index: {}]
  %s4 = inlined_call_operand.vmem [shape: bf16[32,1280], index: 4, kind: output, shape index: {}]
  %s5 = sld [smem:[#allocation0]]
  $region49: #{mobilenetv2_forward.1} parent=0
    _
  %s7 = ssub.s32 1, %s5
  %s8 = scalar_select 0, %s7, %s5
  loop: start=0, step=1, limit=4
  $region2: #{mobilenetv2_forward.1} parent=0 // loop_pre_header
    _
  $region3: #{mobilenetv2_forward.1} parent=0 // loop_header
    %s10 = sphi 0, %s14
    %p11 = scmp.ge.s32.totalorder %s10, 4
    %s20 = sphi 0, %s22
    %s23 = sphi 0, %s20
    %s24 = sphi 0, %s23
    %s40 = sphi 0, %s24
    %s44 = sphi 0, %s44
    %s46 = sphi 0, %s44
    %s47 = sphi 0, %s46
    %s61 = sphi 0, %s47
    %s65 = sphi 0, %s65
    %s67 = sphi 0, %s65
    %s68 = sphi 0, %s67
    %s82 = sphi 0, %s68
    %s86 = sphi 0, %s86
    %s88 = sphi 0, %s86
    %s89 = sphi 0, %s88
    %s103 = sphi 0, %s89
    %s109 = sphi 0, %s111
    %s112 = sphi 0, %s109
    %s113 = sphi 0, %s112
    %s129 = sphi 0, %s113
  $region4: #{mobilenetv2_forward.1} parent=0 // loop_header_branch
    %13 = sbr.rel (%p11) target = $region8
  $region5: #{mobilenetv2_forward.1} parent=0 // loop_body
    %s15 = ssub.s32 %s10, 1
    %s16 = ssub.s32 %s10, 2
    %s17 = sadd.s32 %s10, 1
    %s18 = ssub.s32 %s10, %s17
    %p19 = scmp.eq.s32.totalorder %s18, 0
    %s21 = sadd.s32 %s20, 1
    %s22 = scalar_select %p19, %s20, %s21
    %p25 = pneg %p19
    %p26 = scmp.eq.s32.totalorder %s10, 1
    %p27 = por %p25, %p26
    %p28 = scmp.ne.s32.totalorder %s20, %s23
    %p29 = scmp.eq.s32.totalorder %s10, 0
    %p30 = por %p28, %p29
    %p31 = scmp.ne.s32.totalorder %s20, %s23
    %p32 = scmp.eq.s32.totalorder %s15, 1
    %p33 = por %p31, %p32
    %p34 = scmp.ne.s32.totalorder %s23, %s24
    %p35 = scmp.eq.s32.totalorder %s15, 0
    %p36 = por %p34, %p35
    %p37 = scmp.ne.s32.totalorder %s23, %s24
    %p38 = scmp.eq.s32.totalorder %s16, 1
    %p39 = por %p37, %p38
    %p41 = scmp.ne.s32.totalorder %s24, %s40
    %p42 = scmp.eq.s32.totalorder %s16, 0
    %p43 = por %p41, %p42
    %s45 = sadd.s32 %s44, 1
    %p48 = scmp.eq.s32.totalorder %s10, 1
    %p49 = scmp.ne.s32.totalorder %s44, %s46
    %p50 = scmp.eq.s32.totalorder %s10, 0
    %p51 = por %p49, %p50
    %p52 = scmp.ne.s32.totalorder %s44, %s46
    %p53 = scmp.eq.s32.totalorder %s15, 1
    %p54 = por %p52, %p53
    %p55 = scmp.ne.s32.totalorder %s46, %s47
    %p56 = scmp.eq.s32.totalorder %s15, 0
    %p57 = por %p55, %p56
    %p58 = scmp.ne.s32.totalorder %s46, %s47
    %p59 = scmp.eq.s32.totalorder %s16, 1
    %p60 = por %p58, %p59
    %p62 = scmp.ne.s32.totalorder %s47, %s61
    %p63 = scmp.eq.s32.totalorder %s16, 0
    %p64 = por %p62, %p63
    %s66 = sadd.s32 %s65, 1
    %p69 = scmp.eq.s32.totalorder %s10, 1
    %p70 = scmp.ne.s32.totalorder %s65, %s67
    %p71 = scmp.eq.s32.totalorder %s10, 0
    %p72 = por %p70, %p71
    %p73 = scmp.ne.s32.totalorder %s65, %s67
    %p74 = scmp.eq.s32.totalorder %s15, 1
    %p75 = por %p73, %p74
    %p76 = scmp.ne.s32.totalorder %s67, %s68
    %p77 = scmp.eq.s32.totalorder %s15, 0
    %p78 = por %p76, %p77
    %p79 = scmp.ne.s32.totalorder %s67, %s68
    %p80 = scmp.eq.s32.totalorder %s16, 1
    %p81 = por %p79, %p80
    %p83 = scmp.ne.s32.totalorder %s68, %s82
    %p84 = scmp.eq.s32.totalorder %s16, 0
    %p85 = por %p83, %p84
    %s87 = sadd.s32 %s86, 1
    %p90 = scmp.eq.s32.totalorder %s10, 1
    %p91 = scmp.ne.s32.totalorder %s86, %s88
    %p92 = scmp.eq.s32.totalorder %s10, 0
    %p93 = por %p91, %p92
    %p94 = scmp.ne.s32.totalorder %s86, %s88
    %p95 = scmp.eq.s32.totalorder %s15, 1
    %p96 = por %p94, %p95
    %p97 = scmp.ne.s32.totalorder %s88, %s89
    %p98 = scmp.eq.s32.totalorder %s15, 0
    %p99 = por %p97, %p98
    %p100 = scmp.ne.s32.totalorder %s88, %s89
    %p101 = scmp.eq.s32.totalorder %s16, 1
    %p102 = por %p100, %p101
    %p104 = scmp.ne.s32.totalorder %s89, %s103
    %p105 = scmp.eq.s32.totalorder %s16, 0
    %p106 = por %p104, %p105
    %s107 = ssub.s32 %s10, %s17
    %p108 = scmp.eq.s32.totalorder %s107, 0
    %s110 = sadd.s32 %s109, 1
    %s111 = scalar_select %p108, %s109, %s110
    %p114 = pneg %p108
    %p115 = scmp.eq.s32.totalorder %s10, 1
    %p116 = por %p114, %p115
    %p117 = scmp.ne.s32.totalorder %s109, %s112
    %p118 = scmp.eq.s32.totalorder %s10, 0
    %p119 = por %p117, %p118
    %p120 = scmp.ne.s32.totalorder %s109, %s112
    %p121 = scmp.eq.s32.totalorder %s15, 1
    %p122 = por %p120, %p121
    %p123 = scmp.ne.s32.totalorder %s112, %s113
    %p124 = scmp.eq.s32.totalorder %s15, 0
    %p125 = por %p123, %p124
    %p126 = scmp.ne.s32.totalorder %s112, %s113
    %p127 = scmp.eq.s32.totalorder %s16, 1
    %p128 = por %p126, %p127
    %p130 = scmp.ne.s32.totalorder %s113, %s129
    %p131 = scmp.eq.s32.totalorder %s16, 0
    %p132 = por %p130, %p131
    %p133 = scmp.le.s32.totalorder 1, %s10
    %p134 = scmp.lt.s32.totalorder %s10, 3
    %p135 = pnand %p133, %p134
    %p136 = pneg %p135
    // Predicated region
    $region9: #{mobilenetv2_forward.1} parent=5 // pred_check
      _
    $region10: #{mobilenetv2_forward.1} parent=5 // pred_check_branch
      %138 = sbr.rel (%p135) target = $region12
    $region11: #{mobilenetv2_forward.1} parent=5 // pred_region
      %s139 = ssub.s32 %s10, 1
      // Predicated region
      $region13: #{mobilenetv2_forward.1} parent=11 // pred_check
        %p140 = pneg %p57
      $region14: #{mobilenetv2_forward.1} parent=11 // pred_check_branch
        %142 = sbr.rel (%p140) target = $region16
      $region15: #{mobilenetv2_forward.1} parent=11 // pred_region
        _
      $region16: #{mobilenetv2_forward.1} parent=11 // pred_fallthru
        _
      // Predicated region
      $region17: #{mobilenetv2_forward.1} parent=11 // pred_check
        %p143 = pneg %p78
      $region18: #{mobilenetv2_forward.1} parent=11 // pred_check_branch
        %145 = sbr.rel (%p143) target = $region20
      $region19: #{mobilenetv2_forward.1} parent=11 // pred_region
        _
      $region20: #{mobilenetv2_forward.1} parent=11 // pred_fallthru
        _
      // Predicated region
      $region21: #{mobilenetv2_forward.1} parent=11 // pred_check
        %p146 = pneg %p99
      $region22: #{mobilenetv2_forward.1} parent=11 // pred_check_branch
        %148 = sbr.rel (%p146) target = $region24
      $region23: #{mobilenetv2_forward.1} parent=11 // pred_region
        _
      $region24: #{mobilenetv2_forward.1} parent=11 // pred_fallthru
        _
    $region12: #{mobilenetv2_forward.1} parent=5 // pred_fallthru
      _
    %p149 = scmp.lt.s32.totalorder %s10, 2
    // Predicated region
    $region25: #{mobilenetv2_forward.1} parent=5 // pred_check
      %p150 = pneg %p149
    $region26: #{mobilenetv2_forward.1} parent=5 // pred_check_branch
      %152 = sbr.rel (%p150) target = $region28
    $region27: #{mobilenetv2_forward.1} parent=5 // pred_region
      // Predicated region
      $region29: #{mobilenetv2_forward.1} parent=27 // pred_check
        %p153 = pneg %p30
      $region30: #{mobilenetv2_forward.1} parent=27 // pred_check_branch
        %155 = sbr.rel (%p153) target = $region32
      $region31: #{mobilenetv2_forward.1} parent=27 // pred_region
        %s156 = smul.u32 2, %s10
        %p157 = scmp.lt.s32.totalorder %s156, 3
        %s158 = scalar_select %p157, %s156, 3
        %s159 = smul.addr %s158, 3
        %s160 = smul.addr %s159, 4
        %s161 = scalar_lea.vmem %s0, %s160
        %s162 = smul.u32 2, %s10
      $region32: #{mobilenetv2_forward.1} parent=27 // pred_fallthru
        _
    $region28: #{mobilenetv2_forward.1} parent=5 // pred_fallthru
      _
    %p163 = scmp.le.s32.totalorder 1, %s10
    %p164 = scmp.lt.s32.totalorder %s10, 3
    %p165 = pnand %p163, %p164
    %p166 = pneg %p165
    // Predicated region
    $region33: #{mobilenetv2_forward.1} parent=5 // pred_check
      _
    $region34: #{mobilenetv2_forward.1} parent=5 // pred_check_branch
      %168 = sbr.rel (%p165) target = $region36
    $region35: #{mobilenetv2_forward.1} parent=5 // pred_region
      %s169 = ssub.s32 %s10, 1
      %s170 = smul.u32 2, %s15
      %p171 = scmp.lt.s32.totalorder %s170, 3
      %s172 = scalar_select %p171, %s170, 3
      %s173 = smul.addr %s172, 3
      %s174 = smul.addr %s173, 4
      %s175 = scalar_lea.vmem %s0, %s174
      %p176 = pneg %p36
      %p177 = pneg %p33
      %p178 = pneg %p57
      %p179 = pneg %p54
      %p180 = pneg %p78
      %p181 = pneg %p75
      %p182 = pneg %p99
      %p183 = pneg %p96
      %p184 = pneg %p125
      %p185 = pneg %p122
      %s186 = smul.u32 2, %s15
      %p187 = scmp.lt.s32.totalorder %s186, 3
      %s188 = scalar_select %p187, %s186, 3
      %s189 = smul.addr %s188, 10
      %s190 = smul.addr %s189, 4
      %s191 = scalar_lea.vmem %s4, %s190
      %s192 = smul.u32 2, %s15
      %p193 = scmp.lt.s32.totalorder %s192, 3
      %s194 = scalar_select %p193, %s192, 3
      %s195 = smul.addr %s194, 3
      %s196 = smul.addr %s195, 4
      %s197 = scalar_lea.vmem %s0, %s196
      %s198 = smul.u32 2, %s15
      %s199 = smul.u32 2, %s15
      %p200 = scmp.lt.s32.totalorder %s199, 3
      %s201 = scalar_select %p200, %s199, 3
      %s202 = smul.addr %s201, 10
      %s203 = smul.addr %s202, 4
      %s204 = scalar_lea.vmem %s4, %s203
      %s205 = smul.u32 2, %s15
      %v207 = vld [vmem:[%s197] sm:$0xff]
      %v208 = vld [vmem:[%s197 + $0x8] sm:$0xf]
      %v209 = vld [vmem:[%s197 + $0xc] sm:$0xff]
      %v210 = vld [vmem:[%s197 + $0x14] sm:$0xf]
      %v211 = vld [vmem:[%s1] sm:$0xff]
      %v212 = vld [vmem:[%s1 + $0x8] sm:$0xff]
      %v213 = vld [vmem:[%s1 + $0x10] sm:$0xff]
      %v214 = vld [vmem:[%s1 + $0x18] sm:$0xff]
      %v215 = vld [vmem:[%s1 + $0x20] sm:$0xff]
      %v216 = vld [vmem:[%s1 + $0x28] sm:$0xff]
      %v217 = vld [vmem:[%s1 + $0x30] sm:$0xff]
      %v218 = vld [vmem:[%s1 + $0x38] sm:$0xff]
      %v219 = vld [vmem:[%s1 + $0x40] sm:$0xff]
      %v220 = vld [vmem:[%s1 + $0x48] sm:$0xff]
      %v221 = vld [vmem:[%s1 + $0x50] sm:$0xff]
      %v222 = vld [vmem:[%s1 + $0x58] sm:$0xff]
      %v223 = vld [vmem:[%s1 + $0x60] sm:$0xff]
      %v224 = vld [vmem:[%s1 + $0x68] sm:$0xff]
      %v225 = vld [vmem:[%s1 + $0x70] sm:$0xff]
      %v226 = vld [vmem:[%s1 + $0x78] sm:$0xff]
      %v227 = vld [vmem:[%s1 + $0x80] sm:$0xff]
      %v228 = vld [vmem:[%s1 + $0x88] sm:$0xff]
      %v229 = vld [vmem:[%s1 + $0x90] sm:$0xff]
      %v230 = vld [vmem:[%s1 + $0x98] sm:$0xff]
      %v231 = vld [vmem:[%s1 + $0xa0] sm:$0xff]
      %v232 = vld [vmem:[%s1 + $0xa8] sm:$0xff]
      %v233 = vld [vmem:[%s1 + $0xb0] sm:$0xff]
      %v234 = vld [vmem:[%s1 + $0xb8] sm:$0xff]
      %v235 = vld [vmem:[%s1 + $0xc0] sm:$0xff]
      %v236 = vld [vmem:[%s1 + $0xc8] sm:$0xff]
      %v237 = vld [vmem:[%s1 + $0xd0] sm:$0xff]
      %v238 = vld [vmem:[%s1 + $0xd8] sm:$0xff]
      %v239 = vld [vmem:[%s1 + $0xe0] sm:$0xff]
      %v240 = vld [vmem:[%s1 + $0xe8] sm:$0xff]
      %v241 = vld [vmem:[%s1 + $0xf0] sm:$0xff]
      %v242 = vld [vmem:[%s1 + $0xf8] sm:$0xff]
      %v243 = vld [vmem:[%s1 + $0x100] sm:$0xff]
      %v244 = vld [vmem:[%s1 + $0x108] sm:$0xff]
      %v245 = vld [vmem:[%s1 + $0x110] sm:$0xff]
      %v246 = vld [vmem:[%s1 + $0x118] sm:$0xff]
      %v247 = vld [vmem:[%s1 + $0x120] sm:$0xff]
      %v248 = vld [vmem:[%s1 + $0x128] sm:$0xff]
      %v249 = vld [vmem:[%s1 + $0x130] sm:$0xff]
      %v250 = vld [vmem:[%s1 + $0x138] sm:$0xff]
      %v251 = vld [vmem:[%s1 + $0x140] sm:$0xff]
      %v252 = vld [vmem:[%s1 + $0x148] sm:$0xff]
      %v253 = vld [vmem:[%s1 + $0x150] sm:$0xff]
      %v254 = vld [vmem:[%s1 + $0x158] sm:$0xff]
      %v255 = vld [vmem:[%s1 + $0x160] sm:$0xff]
      %v256 = vld [vmem:[%s1 + $0x168] sm:$0xff]
      %v257 = vld [vmem:[%s1 + $0x170] sm:$0xff]
      %v258 = vld [vmem:[%s1 + $0x178] sm:$0xff]
      %v259 = vld [vmem:[%s1 + $0x180] sm:$0xff]
      %v260 = vld [vmem:[%s1 + $0x188] sm:$0xff]
      %v261 = vld [vmem:[%s1 + $0x190] sm:$0xff]
      %v262 = vld [vmem:[%s1 + $0x198] sm:$0xff]
      %v263 = vld [vmem:[%s1 + $0x1a0] sm:$0xff]
      %v264 = vld [vmem:[%s1 + $0x1a8] sm:$0xff]
      %v265 = vld [vmem:[%s1 + $0x1b0] sm:$0xff]
      %v266 = vld [vmem:[%s1 + $0x1b8] sm:$0xff]
      %v267 = vld [vmem:[%s1 + $0x1c0] sm:$0xff]
      %v268 = vld [vmem:[%s1 + $0x1c8] sm:$0xff]
      %v269 = vld [vmem:[%s1 + $0x1d0] sm:$0xff]
      %v270 = vld [vmem:[%s1 + $0x1d8] sm:$0xff]
      %v271 = vld [vmem:[%s1 + $0x1e0] sm:$0xff]
      %v272 = vld [vmem:[%s1 + $0x1e8] sm:$0xff]
      %v273 = vld [vmem:[%s1 + $0x1f0] sm:$0xff]
      %v274 = vld [vmem:[%s1 + $0x1f8] sm:$0xff]
      %v275 = vld [vmem:[%s1 + $0x200] sm:$0xff]
      %v276 = vld [vmem:[%s1 + $0x208] sm:$0xff]
      %v277 = vld [vmem:[%s1 + $0x210] sm:$0xff]
      %v278 = vld [vmem:[%s1 + $0x218] sm:$0xff]
      %v279 = vld [vmem:[%s1 + $0x220] sm:$0xff]
      %v280 = vld [vmem:[%s1 + $0x228] sm:$0xff]
      %v281 = vld [vmem:[%s1 + $0x230] sm:$0xff]
      %v282 = vld [vmem:[%s1 + $0x238] sm:$0xff]
      %v283 = vld [vmem:[%s1 + $0x240] sm:$0xff]
      %v284 = vld [vmem:[%s1 + $0x248] sm:$0xff]
      %v285 = vld [vmem:[%s1 + $0x250] sm:$0xff]
      %v286 = vld [vmem:[%s1 + $0x258] sm:$0xff]
      %v287 = vld [vmem:[%s1 + $0x260] sm:$0xff]
      %v288 = vld [vmem:[%s1 + $0x268] sm:$0xff]
      %v289 = vld [vmem:[%s1 + $0x270] sm:$0xff]
      %v290 = vld [vmem:[%s1 + $0x278] sm:$0xff]
      %v291 = vld [vmem:[%s1 + $0x280] sm:$0xff]
      %v292 = vld [vmem:[%s1 + $0x288] sm:$0xff]
      %v293 = vld [vmem:[%s1 + $0x290] sm:$0xff]
      %v294 = vld [vmem:[%s1 + $0x298] sm:$0xff]
      %v295 = vld [vmem:[%s1 + $0x2a0] sm:$0xff]
      %v296 = vld [vmem:[%s1 + $0x2a8] sm:$0xff]
      %v297 = vld [vmem:[%s1 + $0x2b0] sm:$0xff]
      %v298 = vld [vmem:[%s1 + $0x2b8] sm:$0xff]
      %v299 = vld [vmem:[%s1 + $0x2c0] sm:$0xff]
      %v300 = vld [vmem:[%s1 + $0x2c8] sm:$0xff]
      %v301 = vld [vmem:[%s1 + $0x2d0] sm:$0xff]
      %v302 = vld [vmem:[%s1 + $0x2d8] sm:$0xff]
      %v303 = vld [vmem:[%s1 + $0x2e0] sm:$0xff]
      %v304 = vld [vmem:[%s1 + $0x2e8] sm:$0xff]
      %v305 = vld [vmem:[%s1 + $0x2f0] sm:$0xff]
      %v306 = vld [vmem:[%s1 + $0x2f8] sm:$0xff]
      %v307 = vld [vmem:[%s1 + $0x300] sm:$0xff]
      %v308 = vld [vmem:[%s1 + $0x308] sm:$0xff]
      %v309 = vld [vmem:[%s1 + $0x310] sm:$0xff]
      %v310 = vld [vmem:[%s1 + $0x318] sm:$0xff]
      %v311 = vld [vmem:[%s1 + $0x320] sm:$0xff]
      %v312 = vld [vmem:[%s1 + $0x328] sm:$0xff]
      %v313 = vld [vmem:[%s1 + $0x330] sm:$0xff]
      %v314 = vld [vmem:[%s1 + $0x338] sm:$0xff]
      %v315 = vld [vmem:[%s1 + $0x340] sm:$0xff]
      %v316 = vld [vmem:[%s1 + $0x348] sm:$0xff]
      %v317 = vld [vmem:[%s1 + $0x350] sm:$0xff]
      %v318 = vld [vmem:[%s1 + $0x358] sm:$0xff]
      %v319 = vld [vmem:[%s1 + $0x360] sm:$0xff]
      %v320 = vld [vmem:[%s1 + $0x368] sm:$0xff]
      %v321 = vld [vmem:[%s1 + $0x370] sm:$0xff]
      %v322 = vld [vmem:[%s1 + $0x378] sm:$0xff]
      %v323 = vld [vmem:[%s1 + $0x380] sm:$0xff]
      %v324 = vld [vmem:[%s1 + $0x388] sm:$0xff]
      %v325 = vld [vmem:[%s1 + $0x390] sm:$0xff]
      %v326 = vld [vmem:[%s1 + $0x398] sm:$0xff]
      %v327 = vld [vmem:[%s1 + $0x3a0] sm:$0xff]
      %v328 = vld [vmem:[%s1 + $0x3a8] sm:$0xff]
      %v329 = vld [vmem:[%s1 + $0x3b0] sm:$0xff]
      %v330 = vld [vmem:[%s1 + $0x3b8] sm:$0xff]
      %v331 = vld [vmem:[%s1 + $0x3c0] sm:$0xff]
      %v332 = vld [vmem:[%s1 + $0x3c8] sm:$0xff]
      %v333 = vld [vmem:[%s1 + $0x3d0] sm:$0xff]
      %v334 = vld [vmem:[%s1 + $0x3d8] sm:$0xff]
      %v335 = vld [vmem:[%s1 + $0x3e0] sm:$0xff]
      %v336 = vld [vmem:[%s1 + $0x3e8] sm:$0xff]
      %v337 = vld [vmem:[%s1 + $0x3f0] sm:$0xff]
      %v338 = vld [vmem:[%s1 + $0x3f8] sm:$0xff]
      %v339 = vld [vmem:[%s1 + $0x400] sm:$0xff]
      %v340 = vld [vmem:[%s1 + $0x408] sm:$0xff]
      %v341 = vld [vmem:[%s1 + $0x410] sm:$0xff]
      %v342 = vld [vmem:[%s1 + $0x418] sm:$0xff]
      %v343 = vld [vmem:[%s1 + $0x420] sm:$0xff]
      %v344 = vld [vmem:[%s1 + $0x428] sm:$0xff]
      %v345 = vld [vmem:[%s1 + $0x430] sm:$0xff]
      %v346 = vld [vmem:[%s1 + $0x438] sm:$0xff]
      %v347 = vld [vmem:[%s1 + $0x440] sm:$0xff]
      %v348 = vld [vmem:[%s1 + $0x448] sm:$0xff]
      %v349 = vld [vmem:[%s1 + $0x450] sm:$0xff]
      %v350 = vld [vmem:[%s1 + $0x458] sm:$0xff]
      %v351 = vld [vmem:[%s1 + $0x460] sm:$0xff]
      %v352 = vld [vmem:[%s1 + $0x468] sm:$0xff]
      %v353 = vld [vmem:[%s1 + $0x470] sm:$0xff]
      %v354 = vld [vmem:[%s1 + $0x478] sm:$0xff]
      %v355 = vld [vmem:[%s1 + $0x480] sm:$0xff]
      %v356 = vld [vmem:[%s1 + $0x488] sm:$0xff]
      %v357 = vld [vmem:[%s1 + $0x490] sm:$0xff]
      %v358 = vld [vmem:[%s1 + $0x498] sm:$0xff]
      %v359 = vld [vmem:[%s1 + $0x4a0] sm:$0xff]
      %v360 = vld [vmem:[%s1 + $0x4a8] sm:$0xff]
      %v361 = vld [vmem:[%s1 + $0x4b0] sm:$0xff]
      %v362 = vld [vmem:[%s1 + $0x4b8] sm:$0xff]
      %v363 = vld [vmem:[%s1 + $0x4c0] sm:$0xff]
      %v364 = vld [vmem:[%s1 + $0x4c8] sm:$0xff]
      %v365 = vld [vmem:[%s1 + $0x4d0] sm:$0xff]
      %v366 = vld [vmem:[%s1 + $0x4d8] sm:$0xff]
      %v367 = vld [vmem:[%s1 + $0x4e0] sm:$0xff]
      %v368 = vld [vmem:[%s1 + $0x4e8] sm:$0xff]
      %v369 = vld [vmem:[%s1 + $0x4f0] sm:$0xff]
      %v370 = vld [vmem:[%s1 + $0x4f8] sm:$0xff]
      %v371 = vld [vmem:[%s1 + $0x500] sm:$0xff]
      %v372 = vld [vmem:[%s1 + $0x508] sm:$0xff]
      %v373 = vld [vmem:[%s1 + $0x510] sm:$0xff]
      %v374 = vld [vmem:[%s1 + $0x518] sm:$0xff]
      %v375 = vld [vmem:[%s1 + $0x520] sm:$0xff]
      %v376 = vld [vmem:[%s1 + $0x528] sm:$0xff]
      %v377 = vld [vmem:[%s1 + $0x530] sm:$0xff]
      %v378 = vld [vmem:[%s1 + $0x538] sm:$0xff]
      %v379 = vld [vmem:[%s1 + $0x540] sm:$0xff]
      %v380 = vld [vmem:[%s1 + $0x548] sm:$0xff]
      %v381 = vld [vmem:[%s1 + $0x550] sm:$0xff]
      %v382 = vld [vmem:[%s1 + $0x558] sm:$0xff]
      %v383 = vld [vmem:[%s1 + $0x560] sm:$0xff]
      %v384 = vld [vmem:[%s1 + $0x568] sm:$0xff]
      %v385 = vld [vmem:[%s1 + $0x570] sm:$0xff]
      %v386 = vld [vmem:[%s1 + $0x578] sm:$0xff]
      %v387 = vld [vmem:[%s1 + $0x580] sm:$0xff]
      %v388 = vld [vmem:[%s1 + $0x588] sm:$0xff]
      %v389 = vld [vmem:[%s1 + $0x590] sm:$0xff]
      %v390 = vld [vmem:[%s1 + $0x598] sm:$0xff]
      %v391 = vld [vmem:[%s1 + $0x5a0] sm:$0xff]
      %v392 = vld [vmem:[%s1 + $0x5a8] sm:$0xff]
      %v393 = vld [vmem:[%s1 + $0x5b0] sm:$0xff]
      %v394 = vld [vmem:[%s1 + $0x5b8] sm:$0xff]
      %v395 = vld [vmem:[%s1 + $0x5c0] sm:$0xff]
      %v396 = vld [vmem:[%s1 + $0x5c8] sm:$0xff]
      %v397 = vld [vmem:[%s1 + $0x5d0] sm:$0xff]
      %v398 = vld [vmem:[%s1 + $0x5d8] sm:$0xff]
      %v399 = vld [vmem:[%s1 + $0x5e0] sm:$0xff]
      %v400 = vld [vmem:[%s1 + $0x5e8] sm:$0xff]
      %v401 = vld [vmem:[%s1 + $0x5f0] sm:$0xff]
      %v402 = vld [vmem:[%s1 + $0x5f8] sm:$0xff]
      %v403 = vld [vmem:[%s1 + $0x600] sm:$0xff]
      %v404 = vld [vmem:[%s1 + $0x608] sm:$0xff]
      %v405 = vld [vmem:[%s1 + $0x610] sm:$0xff]
      %v406 = vld [vmem:[%s1 + $0x618] sm:$0xff]
      %v407 = vld [vmem:[%s1 + $0x620] sm:$0xff]
      %v408 = vld [vmem:[%s1 + $0x628] sm:$0xff]
      %v409 = vld [vmem:[%s1 + $0x630] sm:$0xff]
      %v410 = vld [vmem:[%s1 + $0x638] sm:$0xff]
      %v415 = vunpack.c.l.b16 %v207
      %v416 = vunpack.c.h.b16 %v207
      %v417 = vunpack.c.l.b16 %v208
      %v418 = vunpack.c.l.b16 %v209
      %v419 = vunpack.c.h.b16 %v209
      %v420 = vunpack.c.l.b16 %v210
      %v421 = vpack.c.b16 %v418, %v415
      %v422 = vpack.c.b16 %v419, %v416
      %v423 = vpack.c.b16 %v420, %v417
      %v626 = vunpack.c.l.b16 %v211
      %v627 = vunpack.c.h.b16 %v211
      %v628 = vunpack.c.l.b16 %v212
      %v629 = vunpack.c.h.b16 %v212
      %v630 = vunpack.c.l.b16 %v213
      %v631 = vunpack.c.h.b16 %v213
      %v632 = vunpack.c.l.b16 %v214
      %v633 = vunpack.c.h.b16 %v214
      %v634 = vunpack.c.l.b16 %v215
      %v635 = vunpack.c.h.b16 %v215
      %v636 = vunpack.c.l.b16 %v216
      %v637 = vunpack.c.h.b16 %v216
      %v638 = vunpack.c.l.b16 %v217
      %v639 = vunpack.c.h.b16 %v217
      %v640 = vunpack.c.l.b16 %v218
      %v641 = vunpack.c.h.b16 %v218
      %v642 = vunpack.c.l.b16 %v219
      %v643 = vunpack.c.h.b16 %v219
      %v644 = vunpack.c.l.b16 %v220
      %v645 = vunpack.c.h.b16 %v220
      %v646 = vunpack.c.l.b16 %v221
      %v647 = vunpack.c.h.b16 %v221
      %v648 = vunpack.c.l.b16 %v222
      %v649 = vunpack.c.h.b16 %v222
      %v650 = vunpack.c.l.b16 %v223
      %v651 = vunpack.c.h.b16 %v223
      %v652 = vunpack.c.l.b16 %v224
      %v653 = vunpack.c.h.b16 %v224
      %v654 = vunpack.c.l.b16 %v225
      %v655 = vunpack.c.h.b16 %v225
      %v656 = vunpack.c.l.b16 %v226
      %v657 = vunpack.c.h.b16 %v226
      %v658 = vunpack.c.l.b16 %v227
      %v659 = vunpack.c.h.b16 %v227
      %v660 = vunpack.c.l.b16 %v228
      %v661 = vunpack.c.h.b16 %v228
      %v662 = vunpack.c.l.b16 %v229
      %v663 = vunpack.c.h.b16 %v229
      %v664 = vunpack.c.l.b16 %v230
      %v665 = vunpack.c.h.b16 %v230
      %v666 = vunpack.c.l.b16 %v231
      %v667 = vunpack.c.h.b16 %v231
      %v668 = vunpack.c.l.b16 %v232
      %v669 = vunpack.c.h.b16 %v232
      %v670 = vunpack.c.l.b16 %v233
      %v671 = vunpack.c.h.b16 %v233
      %v672 = vunpack.c.l.b16 %v234
      %v673 = vunpack.c.h.b16 %v234
      %v674 = vunpack.c.l.b16 %v235
      %v675 = vunpack.c.h.b16 %v235
      %v676 = vunpack.c.l.b16 %v236
      %v677 = vunpack.c.h.b16 %v236
      %v678 = vunpack.c.l.b16 %v237
      %v679 = vunpack.c.h.b16 %v237
      %v680 = vunpack.c.l.b16 %v238
      %v681 = vunpack.c.h.b16 %v238
      %v682 = vunpack.c.l.b16 %v239
      %v683 = vunpack.c.h.b16 %v239
      %v684 = vunpack.c.l.b16 %v240
      %v685 = vunpack.c.h.b16 %v240
      %v686 = vunpack.c.l.b16 %v241
      %v687 = vunpack.c.h.b16 %v241
      %v688 = vunpack.c.l.b16 %v242
      %v689 = vunpack.c.h.b16 %v242
      %v690 = vunpack.c.l.b16 %v243
      %v691 = vunpack.c.h.b16 %v243
      %v692 = vunpack.c.l.b16 %v244
      %v693 = vunpack.c.h.b16 %v244
      %v694 = vunpack.c.l.b16 %v245
      %v695 = vunpack.c.h.b16 %v245
      %v696 = vunpack.c.l.b16 %v246
      %v697 = vunpack.c.h.b16 %v246
      %v698 = vunpack.c.l.b16 %v247
      %v699 = vunpack.c.h.b16 %v247
      %v700 = vunpack.c.l.b16 %v248
      %v701 = vunpack.c.h.b16 %v248
      %v702 = vunpack.c.l.b16 %v249
      %v703 = vunpack.c.h.b16 %v249
      %v704 = vunpack.c.l.b16 %v250
      %v705 = vunpack.c.h.b16 %v250
      %v706 = vunpack.c.l.b16 %v251
      %v707 = vunpack.c.h.b16 %v251
      %v708 = vunpack.c.l.b16 %v252
      %v709 = vunpack.c.h.b16 %v252
      %v710 = vunpack.c.l.b16 %v253
      %v711 = vunpack.c.h.b16 %v253
      %v712 = vunpack.c.l.b16 %v254
      %v713 = vunpack.c.h.b16 %v254
      %v714 = vunpack.c.l.b16 %v255
      %v715 = vunpack.c.h.b16 %v255
      %v716 = vunpack.c.l.b16 %v256
      %v717 = vunpack.c.h.b16 %v256
      %v718 = vunpack.c.l.b16 %v257
      %v719 = vunpack.c.h.b16 %v257
      %v720 = vunpack.c.l.b16 %v258
      %v721 = vunpack.c.h.b16 %v258
      %v722 = vunpack.c.l.b16 %v259
      %v723 = vunpack.c.h.b16 %v259
      %v724 = vunpack.c.l.b16 %v260
      %v725 = vunpack.c.h.b16 %v260
      %v726 = vunpack.c.l.b16 %v261
      %v727 = vunpack.c.h.b16 %v261
      %v728 = vunpack.c.l.b16 %v262
      %v729 = vunpack.c.h.b16 %v262
      %v730 = vunpack.c.l.b16 %v263
      %v731 = vunpack.c.h.b16 %v263
      %v732 = vunpack.c.l.b16 %v264
      %v733 = vunpack.c.h.b16 %v264
      %v734 = vunpack.c.l.b16 %v265
      %v735 = vunpack.c.h.b16 %v265
      %v736 = vunpack.c.l.b16 %v266
      %v737 = vunpack.c.h.b16 %v266
      %v738 = vunpack.c.l.b16 %v267
      %v739 = vunpack.c.h.b16 %v267
      %v740 = vunpack.c.l.b16 %v268
      %v741 = vunpack.c.h.b16 %v268
      %v742 = vunpack.c.l.b16 %v269
      %v743 = vunpack.c.h.b16 %v269
      %v744 = vunpack.c.l.b16 %v270
      %v745 = vunpack.c.h.b16 %v270
      %v746 = vunpack.c.l.b16 %v271
      %v747 = vunpack.c.h.b16 %v271
      %v748 = vunpack.c.l.b16 %v272
      %v749 = vunpack.c.h.b16 %v272
      %v750 = vunpack.c.l.b16 %v273
      %v751 = vunpack.c.h.b16 %v273
      %v752 = vunpack.c.l.b16 %v274
      %v753 = vunpack.c.h.b16 %v274
      %v754 = vunpack.c.l.b16 %v275
      %v755 = vunpack.c.h.b16 %v275
      %v756 = vunpack.c.l.b16 %v276
      %v757 = vunpack.c.h.b16 %v276
      %v758 = vunpack.c.l.b16 %v277
      %v759 = vunpack.c.h.b16 %v277
      %v760 = vunpack.c.l.b16 %v278
      %v761 = vunpack.c.h.b16 %v278
      %v762 = vunpack.c.l.b16 %v279
      %v763 = vunpack.c.h.b16 %v279
      %v764 = vunpack.c.l.b16 %v280
      %v765 = vunpack.c.h.b16 %v280
      %v766 = vunpack.c.l.b16 %v281
      %v767 = vunpack.c.h.b16 %v281
      %v768 = vunpack.c.l.b16 %v282
      %v769 = vunpack.c.h.b16 %v282
      %v770 = vunpack.c.l.b16 %v283
      %v771 = vunpack.c.h.b16 %v283
      %v772 = vunpack.c.l.b16 %v284
      %v773 = vunpack.c.h.b16 %v284
      %v774 = vunpack.c.l.b16 %v285
      %v775 = vunpack.c.h.b16 %v285
      %v776 = vunpack.c.l.b16 %v286
      %v777 = vunpack.c.h.b16 %v286
      %v778 = vunpack.c.l.b16 %v287
      %v779 = vunpack.c.h.b16 %v287
      %v780 = vunpack.c.l.b16 %v288
      %v781 = vunpack.c.h.b16 %v288
      %v782 = vunpack.c.l.b16 %v289
      %v783 = vunpack.c.h.b16 %v289
      %v784 = vunpack.c.l.b16 %v290
      %v785 = vunpack.c.h.b16 %v290
      %v786 = vunpack.c.l.b16 %v291
      %v787 = vunpack.c.h.b16 %v291
      %v788 = vunpack.c.l.b16 %v292
      %v789 = vunpack.c.h.b16 %v292
      %v790 = vunpack.c.l.b16 %v293
      %v791 = vunpack.c.h.b16 %v293
      %v792 = vunpack.c.l.b16 %v294
      %v793 = vunpack.c.h.b16 %v294
      %v794 = vunpack.c.l.b16 %v295
      %v795 = vunpack.c.h.b16 %v295
      %v796 = vunpack.c.l.b16 %v296
      %v797 = vunpack.c.h.b16 %v296
      %v798 = vunpack.c.l.b16 %v297
      %v799 = vunpack.c.h.b16 %v297
      %v800 = vunpack.c.l.b16 %v298
      %v801 = vunpack.c.h.b16 %v298
      %v802 = vunpack.c.l.b16 %v299
      %v803 = vunpack.c.h.b16 %v299
      %v804 = vunpack.c.l.b16 %v300
      %v805 = vunpack.c.h.b16 %v300
      %v806 = vunpack.c.l.b16 %v301
      %v807 = vunpack.c.h.b16 %v301
      %v808 = vunpack.c.l.b16 %v302
      %v809 = vunpack.c.h.b16 %v302
      %v810 = vunpack.c.l.b16 %v303
      %v811 = vunpack.c.h.b16 %v303
      %v812 = vunpack.c.l.b16 %v304
      %v813 = vunpack.c.h.b16 %v304
      %v814 = vunpack.c.l.b16 %v305
      %v815 = vunpack.c.h.b16 %v305
      %v816 = vunpack.c.l.b16 %v306
      %v817 = vunpack.c.h.b16 %v306
      %v818 = vunpack.c.l.b16 %v307
      %v819 = vunpack.c.h.b16 %v307
      %v820 = vunpack.c.l.b16 %v308
      %v821 = vunpack.c.h.b16 %v308
      %v822 = vunpack.c.l.b16 %v309
      %v823 = vunpack.c.h.b16 %v309
      %v824 = vunpack.c.l.b16 %v310
      %v825 = vunpack.c.h.b16 %v310
      %v826 = vunpack.c.l.b16 %v311
      %v827 = vunpack.c.h.b16 %v311
      %v828 = vunpack.c.l.b16 %v312
      %v829 = vunpack.c.h.b16 %v312
      %v830 = vunpack.c.l.b16 %v313
      %v831 = vunpack.c.h.b16 %v313
      %v832 = vunpack.c.l.b16 %v314
      %v833 = vunpack.c.h.b16 %v314
      %v834 = vunpack.c.l.b16 %v315
      %v835 = vunpack.c.h.b16 %v315
      %v836 = vunpack.c.l.b16 %v316
      %v837 = vunpack.c.h.b16 %v316
      %v838 = vunpack.c.l.b16 %v317
      %v839 = vunpack.c.h.b16 %v317
      %v840 = vunpack.c.l.b16 %v318
      %v841 = vunpack.c.h.b16 %v318
      %v842 = vunpack.c.l.b16 %v319
      %v843 = vunpack.c.h.b16 %v319
      %v844 = vunpack.c.l.b16 %v320
      %v845 = vunpack.c.h.b16 %v320
      %v846 = vunpack.c.l.b16 %v321
      %v847 = vunpack.c.h.b16 %v321
      %v848 = vunpack.c.l.b16 %v322
      %v849 = vunpack.c.h.b16 %v322
      %v850 = vunpack.c.l.b16 %v323
      %v851 = vunpack.c.h.b16 %v323
      %v852 = vunpack.c.l.b16 %v324
      %v853 = vunpack.c.h.b16 %v324
      %v854 = vunpack.c.l.b16 %v325
      %v855 = vunpack.c.h.b16 %v325
      %v856 = vunpack.c.l.b16 %v326
      %v857 = vunpack.c.h.b16 %v326
      %v858 = vunpack.c.l.b16 %v327
      %v859 = vunpack.c.h.b16 %v327
      %v860 = vunpack.c.l.b16 %v328
      %v861 = vunpack.c.h.b16 %v328
      %v862 = vunpack.c.l.b16 %v329
      %v863 = vunpack.c.h.b16 %v329
      %v864 = vunpack.c.l.b16 %v330
      %v865 = vunpack.c.h.b16 %v330
      %v866 = vunpack.c.l.b16 %v331
      %v867 = vunpack.c.h.b16 %v331
      %v868 = vunpack.c.l.b16 %v332
      %v869 = vunpack.c.h.b16 %v332
      %v870 = vunpack.c.l.b16 %v333
      %v871 = vunpack.c.h.b16 %v333
      %v872 = vunpack.c.l.b16 %v334
      %v873 = vunpack.c.h.b16 %v334
      %v874 = vunpack.c.l.b16 %v335
      %v875 = vunpack.c.h.b16 %v335
      %v876 = vunpack.c.l.b16 %v336
      %v877 = vunpack.c.h.b16 %v336
      %v878 = vunpack.c.l.b16 %v337
      %v879 = vunpack.c.h.b16 %v337
      %v880 = vunpack.c.l.b16 %v338
      %v881 = vunpack.c.h.b16 %v338
      %v882 = vunpack.c.l.b16 %v339
      %v883 = vunpack.c.h.b16 %v339
      %v884 = vunpack.c.l.b16 %v340
      %v885 = vunpack.c.h.b16 %v340
      %v886 = vunpack.c.l.b16 %v341
      %v887 = vunpack.c.h.b16 %v341
      %v888 = vunpack.c.l.b16 %v342
      %v889 = vunpack.c.h.b16 %v342
      %v890 = vunpack.c.l.b16 %v343
      %v891 = vunpack.c.h.b16 %v343
      %v892 = vunpack.c.l.b16 %v344
      %v893 = vunpack.c.h.b16 %v344
      %v894 = vunpack.c.l.b16 %v345
      %v895 = vunpack.c.h.b16 %v345
      %v896 = vunpack.c.l.b16 %v346
      %v897 = vunpack.c.h.b16 %v346
      %v898 = vunpack.c.l.b16 %v347
      %v899 = vunpack.c.h.b16 %v347
      %v900 = vunpack.c.l.b16 %v348
      %v901 = vunpack.c.h.b16 %v348
      %v902 = vunpack.c.l.b16 %v349
      %v903 = vunpack.c.h.b16 %v349
      %v904 = vunpack.c.l.b16 %v350
      %v905 = vunpack.c.h.b16 %v350
      %v906 = vunpack.c.l.b16 %v351
      %v907 = vunpack.c.h.b16 %v351
      %v908 = vunpack.c.l.b16 %v352
      %v909 = vunpack.c.h.b16 %v352
      %v910 = vunpack.c.l.b16 %v353
      %v911 = vunpack.c.h.b16 %v353
      %v912 = vunpack.c.l.b16 %v354
      %v913 = vunpack.c.h.b16 %v354
      %v914 = vunpack.c.l.b16 %v355
      %v915 = vunpack.c.h.b16 %v355
      %v916 = vunpack.c.l.b16 %v356
      %v917 = vunpack.c.h.b16 %v356
      %v918 = vunpack.c.l.b16 %v357
      %v919 = vunpack.c.h.b16 %v357
      %v920 = vunpack.c.l.b16 %v358
      %v921 = vunpack.c.h.b16 %v358
      %v922 = vunpack.c.l.b16 %v359
      %v923 = vunpack.c.h.b16 %v359
      %v924 = vunpack.c.l.b16 %v360
      %v925 = vunpack.c.h.b16 %v360
      %v926 = vunpack.c.l.b16 %v361
      %v927 = vunpack.c.h.b16 %v361
      %v928 = vunpack.c.l.b16 %v362
      %v929 = vunpack.c.h.b16 %v362
      %v930 = vunpack.c.l.b16 %v363
      %v931 = vunpack.c.h.b16 %v363
      %v932 = vunpack.c.l.b16 %v364
      %v933 = vunpack.c.h.b16 %v364
      %v934 = vunpack.c.l.b16 %v365
      %v935 = vunpack.c.h.b16 %v365
      %v936 = vunpack.c.l.b16 %v366
      %v937 = vunpack.c.h.b16 %v366
      %v938 = vunpack.c.l.b16 %v367
      %v939 = vunpack.c.h.b16 %v367
      %v940 = vunpack.c.l.b16 %v368
      %v941 = vunpack.c.h.b16 %v368
      %v942 = vunpack.c.l.b16 %v369
      %v943 = vunpack.c.h.b16 %v369
      %v944 = vunpack.c.l.b16 %v370
      %v945 = vunpack.c.h.b16 %v370
      %v946 = vunpack.c.l.b16 %v371
      %v947 = vunpack.c.h.b16 %v371
      %v948 = vunpack.c.l.b16 %v372
      %v949 = vunpack.c.h.b16 %v372
      %v950 = vunpack.c.l.b16 %v373
      %v951 = vunpack.c.h.b16 %v373
      %v952 = vunpack.c.l.b16 %v374
      %v953 = vunpack.c.h.b16 %v374
      %v954 = vunpack.c.l.b16 %v375
      %v955 = vunpack.c.h.b16 %v375
      %v956 = vunpack.c.l.b16 %v376
      %v957 = vunpack.c.h.b16 %v376
      %v958 = vunpack.c.l.b16 %v377
      %v959 = vunpack.c.h.b16 %v377
      %v960 = vunpack.c.l.b16 %v378
      %v961 = vunpack.c.h.b16 %v378
      %v962 = vunpack.c.l.b16 %v379
      %v963 = vunpack.c.h.b16 %v379
      %v964 = vunpack.c.l.b16 %v380
      %v965 = vunpack.c.h.b16 %v380
      %v966 = vunpack.c.l.b16 %v381
      %v967 = vunpack.c.h.b16 %v381
      %v968 = vunpack.c.l.b16 %v382
      %v969 = vunpack.c.h.b16 %v382
      %v970 = vunpack.c.l.b16 %v383
      %v971 = vunpack.c.h.b16 %v383
      %v972 = vunpack.c.l.b16 %v384
      %v973 = vunpack.c.h.b16 %v384
      %v974 = vunpack.c.l.b16 %v385
      %v975 = vunpack.c.h.b16 %v385
      %v976 = vunpack.c.l.b16 %v386
      %v977 = vunpack.c.h.b16 %v386
      %v978 = vunpack.c.l.b16 %v387
      %v979 = vunpack.c.h.b16 %v387
      %v980 = vunpack.c.l.b16 %v388
      %v981 = vunpack.c.h.b16 %v388
      %v982 = vunpack.c.l.b16 %v389
      %v983 = vunpack.c.h.b16 %v389
      %v984 = vunpack.c.l.b16 %v390
      %v985 = vunpack.c.h.b16 %v390
      %v986 = vunpack.c.l.b16 %v391
      %v987 = vunpack.c.h.b16 %v391
      %v988 = vunpack.c.l.b16 %v392
      %v989 = vunpack.c.h.b16 %v392
      %v990 = vunpack.c.l.b16 %v393
      %v991 = vunpack.c.h.b16 %v393
      %v992 = vunpack.c.l.b16 %v394
      %v993 = vunpack.c.h.b16 %v394
      %v994 = vunpack.c.l.b16 %v395
      %v995 = vunpack.c.h.b16 %v395
      %v996 = vunpack.c.l.b16 %v396
      %v997 = vunpack.c.h.b16 %v396
      %v998 = vunpack.c.l.b16 %v397
      %v999 = vunpack.c.h.b16 %v397
      %v1000 = vunpack.c.l.b16 %v398
      %v1001 = vunpack.c.h.b16 %v398
      %v1002 = vunpack.c.l.b16 %v399
      %v1003 = vunpack.c.h.b16 %v399
      %v1004 = vunpack.c.l.b16 %v400
      %v1005 = vunpack.c.h.b16 %v400
      %v1006 = vunpack.c.l.b16 %v401
      %v1007 = vunpack.c.h.b16 %v401
      %v1008 = vunpack.c.l.b16 %v402
      %v1009 = vunpack.c.h.b16 %v402
      %v1010 = vunpack.c.l.b16 %v403
      %v1011 = vunpack.c.h.b16 %v403
      %v1012 = vunpack.c.l.b16 %v404
      %v1013 = vunpack.c.h.b16 %v404
      %v1014 = vunpack.c.l.b16 %v405
      %v1015 = vunpack.c.h.b16 %v405
      %v1016 = vunpack.c.l.b16 %v406
      %v1017 = vunpack.c.h.b16 %v406
      %v1018 = vunpack.c.l.b16 %v407
      %v1019 = vunpack.c.h.b16 %v407
      %v1020 = vunpack.c.l.b16 %v408
      %v1021 = vunpack.c.h.b16 %v408
      %v1022 = vunpack.c.l.b16 %v409
      %v1023 = vunpack.c.h.b16 %v409
      %v1024 = vunpack.c.l.b16 %v410
      %v1025 = vunpack.c.h.b16 %v410
      %v1026 = vpack.c.b16 %v636, %v626
      %v1027 = vpack.c.b16 %v637, %v627
      %v1028 = vpack.c.b16 %v638, %v628
      %v1029 = vpack.c.b16 %v639, %v629
      %v1030 = vpack.c.b16 %v640, %v630
      %v1031 = vpack.c.b16 %v641, %v631
      %v1032 = vpack.c.b16 %v642, %v632
      %v1033 = vpack.c.b16 %v643, %v633
      %v1034 = vpack.c.b16 %v644, %v634
      %v1035 = vpack.c.b16 %v645, %v635
      %v1036 = vpack.c.b16 %v656, %v646
      %v1037 = vpack.c.b16 %v657, %v647
      %v1038 = vpack.c.b16 %v658, %v648
      %v1039 = vpack.c.b16 %v659, %v649
      %v1040 = vpack.c.b16 %v660, %v650
      %v1041 = vpack.c.b16 %v661, %v651
      %v1042 = vpack.c.b16 %v662, %v652
      %v1043 = vpack.c.b16 %v663, %v653
      %v1044 = vpack.c.b16 %v664, %v654
      %v1045 = vpack.c.b16 %v665, %v655
      %v1046 = vpack.c.b16 %v676, %v666
      %v1047 = vpack.c.b16 %v677, %v667
      %v1048 = vpack.c.b16 %v678, %v668
      %v1049 = vpack.c.b16 %v679, %v669
      %v1050 = vpack.c.b16 %v680, %v670
      %v1051 = vpack.c.b16 %v681, %v671
      %v1052 = vpack.c.b16 %v682, %v672
      %v1053 = vpack.c.b16 %v683, %v673
      %v1054 = vpack.c.b16 %v684, %v674
      %v1055 = vpack.c.b16 %v685, %v675
      %v1056 = vpack.c.b16 %v696, %v686
      %v1057 = vpack.c.b16 %v697, %v687
      %v1058 = vpack.c.b16 %v698, %v688
      %v1059 = vpack.c.b16 %v699, %v689
      %v1060 = vpack.c.b16 %v700, %v690
      %v1061 = vpack.c.b16 %v701, %v691
      %v1062 = vpack.c.b16 %v702, %v692
      %v1063 = vpack.c.b16 %v703, %v693
      %v1064 = vpack.c.b16 %v704, %v694
      %v1065 = vpack.c.b16 %v705, %v695
      %v1066 = vpack.c.b16 %v716, %v706
      %v1067 = vpack.c.b16 %v717, %v707
      %v1068 = vpack.c.b16 %v718, %v708
      %v1069 = vpack.c.b16 %v719, %v709
      %v1070 = vpack.c.b16 %v720, %v710
      %v1071 = vpack.c.b16 %v721, %v711
      %v1072 = vpack.c.b16 %v722, %v712
      %v1073 = vpack.c.b16 %v723, %v713
      %v1074 = vpack.c.b16 %v724, %v714
      %v1075 = vpack.c.b16 %v725, %v715
      %v1076 = vpack.c.b16 %v736, %v726
      %v1077 = vpack.c.b16 %v737, %v727
      %v1078 = vpack.c.b16 %v738, %v728
      %v1079 = vpack.c.b16 %v739, %v729
      %v1080 = vpack.c.b16 %v740, %v730
      %v1081 = vpack.c.b16 %v741, %v731
      %v1082 = vpack.c.b16 %v742, %v732
      %v1083 = vpack.c.b16 %v743, %v733
      %v1084 = vpack.c.b16 %v744, %v734
      %v1085 = vpack.c.b16 %v745, %v735
      %v1086 = vpack.c.b16 %v756, %v746
      %v1087 = vpack.c.b16 %v757, %v747
      %v1088 = vpack.c.b16 %v758, %v748
      %v1089 = vpack.c.b16 %v759, %v749
      %v1090 = vpack.c.b16 %v760, %v750
      %v1091 = vpack.c.b16 %v761, %v751
      %v1092 = vpack.c.b16 %v762, %v752
      %v1093 = vpack.c.b16 %v763, %v753
      %v1094 = vpack.c.b16 %v764, %v754
      %v1095 = vpack.c.b16 %v765, %v755
      %v1096 = vpack.c.b16 %v776, %v766
      %v1097 = vpack.c.b16 %v777, %v767
      %v1098 = vpack.c.b16 %v778, %v768
      %v1099 = vpack.c.b16 %v779, %v769
      %v1100 = vpack.c.b16 %v780, %v770
      %v1101 = vpack.c.b16 %v781, %v771
      %v1102 = vpack.c.b16 %v782, %v772
      %v1103 = vpack.c.b16 %v783, %v773
      %v1104 = vpack.c.b16 %v784, %v774
      %v1105 = vpack.c.b16 %v785, %v775
      %v1106 = vpack.c.b16 %v796, %v786
      %v1107 = vpack.c.b16 %v797, %v787
      %v1108 = vpack.c.b16 %v798, %v788
      %v1109 = vpack.c.b16 %v799, %v789
      %v1110 = vpack.c.b16 %v800, %v790
      %v1111 = vpack.c.b16 %v801, %v791
      %v1112 = vpack.c.b16 %v802, %v792
      %v1113 = vpack.c.b16 %v803, %v793
      %v1114 = vpack.c.b16 %v804, %v794
      %v1115 = vpack.c.b16 %v805, %v795
      %v1116 = vpack.c.b16 %v816, %v806
      %v1117 = vpack.c.b16 %v817, %v807
      %v1118 = vpack.c.b16 %v818, %v808
      %v1119 = vpack.c.b16 %v819, %v809
      %v1120 = vpack.c.b16 %v820, %v810
      %v1121 = vpack.c.b16 %v821, %v811
      %v1122 = vpack.c.b16 %v822, %v812
      %v1123 = vpack.c.b16 %v823, %v813
      %v1124 = vpack.c.b16 %v824, %v814
      %v1125 = vpack.c.b16 %v825, %v815
      %v1126 = vpack.c.b16 %v836, %v826
      %v1127 = vpack.c.b16 %v837, %v827
      %v1128 = vpack.c.b16 %v838, %v828
      %v1129 = vpack.c.b16 %v839, %v829
      %v1130 = vpack.c.b16 %v840, %v830
      %v1131 = vpack.c.b16 %v841, %v831
      %v1132 = vpack.c.b16 %v842, %v832
      %v1133 = vpack.c.b16 %v843, %v833
      %v1134 = vpack.c.b16 %v844, %v834
      %v1135 = vpack.c.b16 %v845, %v835
      %v1136 = vpack.c.b16 %v856, %v846
      %v1137 = vpack.c.b16 %v857, %v847
      %v1138 = vpack.c.b16 %v858, %v848
      %v1139 = vpack.c.b16 %v859, %v849
      %v1140 = vpack.c.b16 %v860, %v850
      %v1141 = vpack.c.b16 %v861, %v851
      %v1142 = vpack.c.b16 %v862, %v852
      %v1143 = vpack.c.b16 %v863, %v853
      %v1144 = vpack.c.b16 %v864, %v854
      %v1145 = vpack.c.b16 %v865, %v855
      %v1146 = vpack.c.b16 %v876, %v866
      %v1147 = vpack.c.b16 %v877, %v867
      %v1148 = vpack.c.b16 %v878, %v868
      %v1149 = vpack.c.b16 %v879, %v869
      %v1150 = vpack.c.b16 %v880, %v870
      %v1151 = vpack.c.b16 %v881, %v871
      %v1152 = vpack.c.b16 %v882, %v872
      %v1153 = vpack.c.b16 %v883, %v873
      %v1154 = vpack.c.b16 %v884, %v874
      %v1155 = vpack.c.b16 %v885, %v875
      %v1156 = vpack.c.b16 %v896, %v886
      %v1157 = vpack.c.b16 %v897, %v887
      %v1158 = vpack.c.b16 %v898, %v888
      %v1159 = vpack.c.b16 %v899, %v889
      %v1160 = vpack.c.b16 %v900, %v890
      %v1161 = vpack.c.b16 %v901, %v891
      %v1162 = vpack.c.b16 %v902, %v892
      %v1163 = vpack.c.b16 %v903, %v893
      %v1164 = vpack.c.b16 %v904, %v894
      %v1165 = vpack.c.b16 %v905, %v895
      %v1166 = vpack.c.b16 %v916, %v906
      %v1167 = vpack.c.b16 %v917, %v907
      %v1168 = vpack.c.b16 %v918, %v908
      %v1169 = vpack.c.b16 %v919, %v909
      %v1170 = vpack.c.b16 %v920, %v910
      %v1171 = vpack.c.b16 %v921, %v911
      %v1172 = vpack.c.b16 %v922, %v912
      %v1173 = vpack.c.b16 %v923, %v913
      %v1174 = vpack.c.b16 %v924, %v914
      %v1175 = vpack.c.b16 %v925, %v915
      %v1176 = vpack.c.b16 %v936, %v926
      %v1177 = vpack.c.b16 %v937, %v927
      %v1178 = vpack.c.b16 %v938, %v928
      %v1179 = vpack.c.b16 %v939, %v929
      %v1180 = vpack.c.b16 %v940, %v930
      %v1181 = vpack.c.b16 %v941, %v931
      %v1182 = vpack.c.b16 %v942, %v932
      %v1183 = vpack.c.b16 %v943, %v933
      %v1184 = vpack.c.b16 %v944, %v934
      %v1185 = vpack.c.b16 %v945, %v935
      %v1186 = vpack.c.b16 %v956, %v946
      %v1187 = vpack.c.b16 %v957, %v947
      %v1188 = vpack.c.b16 %v958, %v948
      %v1189 = vpack.c.b16 %v959, %v949
      %v1190 = vpack.c.b16 %v960, %v950
      %v1191 = vpack.c.b16 %v961, %v951
      %v1192 = vpack.c.b16 %v962, %v952
      %v1193 = vpack.c.b16 %v963, %v953
      %v1194 = vpack.c.b16 %v964, %v954
      %v1195 = vpack.c.b16 %v965, %v955
      %v1196 = vpack.c.b16 %v976, %v966
      %v1197 = vpack.c.b16 %v977, %v967
      %v1198 = vpack.c.b16 %v978, %v968
      %v1199 = vpack.c.b16 %v979, %v969
      %v1200 = vpack.c.b16 %v980, %v970
      %v1201 = vpack.c.b16 %v981, %v971
      %v1202 = vpack.c.b16 %v982, %v972
      %v1203 = vpack.c.b16 %v983, %v973
      %v1204 = vpack.c.b16 %v984, %v974
      %v1205 = vpack.c.b16 %v985, %v975
      %v1206 = vpack.c.b16 %v996, %v986
      %v1207 = vpack.c.b16 %v997, %v987
      %v1208 = vpack.c.b16 %v998, %v988
      %v1209 = vpack.c.b16 %v999, %v989
      %v1210 = vpack.c.b16 %v1000, %v990
      %v1211 = vpack.c.b16 %v1001, %v991
      %v1212 = vpack.c.b16 %v1002, %v992
      %v1213 = vpack.c.b16 %v1003, %v993
      %v1214 = vpack.c.b16 %v1004, %v994
      %v1215 = vpack.c.b16 %v1005, %v995
      %v1216 = vpack.c.b16 %v1016, %v1006
      %v1217 = vpack.c.b16 %v1017, %v1007
      %v1218 = vpack.c.b16 %v1018, %v1008
      %v1219 = vpack.c.b16 %v1019, %v1009
      %v1220 = vpack.c.b16 %v1020, %v1010
      %v1221 = vpack.c.b16 %v1021, %v1011
      %v1222 = vpack.c.b16 %v1022, %v1012
      %v1223 = vpack.c.b16 %v1023, %v1013
      %v1224 = vpack.c.b16 %v1024, %v1014
      %v1225 = vpack.c.b16 %v1025, %v1015
      %vm1426 = vcmask 523264
      %v1428 = vsel %vm1426, %v423, 0
      %1430 = vmatprep.subr.bf16.mxu0 %v1097
      %1431 = vmatpush1.bf16.msra.mxu0 %v1096
      %1432 = vmatprep.subr.bf16.mxu0 %v1087
      %1433 = vmatpush1.bf16.msra.mxu0 %v1086
      %1434 = vmatprep.subr.bf16.mxu0 %v1077
      %1435 = vmatpush1.bf16.msra.mxu0 %v1076
      %1436 = vmatprep.subr.bf16.mxu0 %v1067
      %1437 = vmatpush1.bf16.msra.mxu0 %v1066
      %1438 = vmatprep.subr.bf16.mxu0 %v1057
      %1439 = vmatpush1.bf16.msra.mxu0 %v1056
      %1440 = vmatprep.subr.bf16.mxu0 %v1047
      %1441 = vmatpush1.bf16.msra.mxu0 %v1046
      %1442 = vmatprep.subr.bf16.mxu0 %v1037
      %1443 = vmatpush1.bf16.msra.mxu0 %v1036
      %1444 = vmatprep.subr.bf16.mxu0 %v1027
      %1445 = vmatpush1.bf16.msra.mxu0 %v1026
      %1446 = vmatprep.subr.bf16.mxu0 %v1177
      %1447 = vmatpush2.bf16.msra.mxu0 %v1176
      %1448 = vmatprep.subr.bf16.mxu0 %v1167
      %1449 = vmatpush2.bf16.msra.mxu0 %v1166
      %1450 = vmatprep.subr.bf16.mxu0 %v1157
      %1451 = vmatpush2.bf16.msra.mxu0 %v1156
      %1452 = vmatprep.subr.bf16.mxu0 %v1147
      %1453 = vmatpush2.bf16.msra.mxu0 %v1146
      %1454 = vmatprep.subr.bf16.mxu0 %v1137
      %1455 = vmatpush2.bf16.msra.mxu0 %v1136
      %1456 = vmatprep.subr.bf16.mxu0 %v1127
      %1457 = vmatpush2.bf16.msra.mxu0 %v1126
      %1458 = vmatprep.subr.bf16.mxu0 %v1117
      %1459 = vmatpush2.bf16.msra.mxu0 %v1116
      %1460 = vmatprep.subr.bf16.mxu0 %v1107
      %1461 = vmatpush2.bf16.msra.mxu0 %v1106
      %1462 = vmatprep.mubr.bf16.mxu0 %v422
      %1463 = vmatmul.mubr.bf16.gmra.mxu0 %v421
      %v1464 = vpop.f32.mrf.mxu0
      %v1465 = vadd.f32 0.0, %v1464
      %v1466 = vpop.f32.mrf.mxu0
      %v1467 = vadd.f32 0.0, %v1466
      %v1468 = vpop.f32.mrf.mxu0
      %v1469 = vadd.f32 0.0, %v1468
      %v1470 = vpop.f32.mrf.mxu0
      %v1471 = vadd.f32 0.0, %v1470
      %1472 = vdwg.mxu0
      %1473 = vmatprep.subr.bf16.mxu0 0
      %1474 = vmatpush1.bf16.msra.mxu0 0
      %1475 = vmatprep.subr.bf16.mxu0 0
      %1476 = vmatpush1.bf16.msra.mxu0 0
      %1477 = vmatprep.subr.bf16.mxu0 0
      %1478 = vmatpush1.bf16.msra.mxu0 0
      %1479 = vmatprep.subr.bf16.mxu0 0
      %1480 = vmatpush1.bf16.msra.mxu0 0
      %1481 = vmatprep.subr.bf16.mxu0 %v1217
      %1482 = vmatpush1.bf16.msra.mxu0 %v1216
      %1483 = vmatprep.subr.bf16.mxu0 %v1207
      %1484 = vmatpush1.bf16.msra.mxu0 %v1206
      %1485 = vmatprep.subr.bf16.mxu0 %v1197
      %1486 = vmatpush1.bf16.msra.mxu0 %v1196
      %1487 = vmatprep.subr.bf16.mxu0 %v1187
      %1488 = vmatpush1.bf16.msra.mxu0 %v1186
      %1489 = vmatprep.subr.bf16.mxu0 0
      %1490 = vmatpush2.bf16.msra.mxu0 0
      %1491 = vmatprep.subr.bf16.mxu0 0
      %1492 = vmatpush2.bf16.msra.mxu0 0
      %1493 = vmatprep.subr.bf16.mxu0 0
      %1494 = vmatpush2.bf16.msra.mxu0 0
      %1495 = vmatprep.subr.bf16.mxu0 0
      %1496 = vmatpush2.bf16.msra.mxu0 0
      %1497 = vmatprep.subr.bf16.mxu0 0
      %1498 = vmatpush2.bf16.msra.mxu0 0
      %1499 = vmatprep.subr.bf16.mxu0 0
      %1500 = vmatpush2.bf16.msra.mxu0 0
      %1501 = vmatprep.subr.bf16.mxu0 0
      %1502 = vmatpush2.bf16.msra.mxu0 0
      %1503 = vmatprep.subr.bf16.mxu0 0
      %1504 = vmatpush2.bf16.msra.mxu0 0
      %1505 = vmatprep.mubr.bf16.mxu0 0
      %1506 = vmatmul.mubr.bf16.gmra.mxu0 %v1428
      %v1507 = vpop.f32.mrf.mxu0
      %v1508 = vadd.f32 %v1465, %v1507
      %v1509 = vpop.f32.mrf.mxu0
      %v1510 = vadd.f32 %v1467, %v1509
      %v1511 = vpop.f32.mrf.mxu0
      %v1512 = vadd.f32 %v1469, %v1511
      %v1513 = vpop.f32.mrf.mxu0
      %v1514 = vadd.f32 %v1471, %v1513
      %1515 = vdwg.mxu0
      %1516 = vmatprep.subr.bf16.mxu0 %v1099
      %1517 = vmatpush1.bf16.msra.mxu0 %v1098
      %1518 = vmatprep.subr.bf16.mxu0 %v1089
      %1519 = vmatpush1.bf16.msra.mxu0 %v1088
      %1520 = vmatprep.subr.bf16.mxu0 %v1079
      %1521 = vmatpush1.bf16.msra.mxu0 %v1078
      %1522 = vmatprep.subr.bf16.mxu0 %v1069
      %1523 = vmatpush1.bf16.msra.mxu0 %v1068
      %1524 = vmatprep.subr.bf16.mxu0 %v1059
      %1525 = vmatpush1.bf16.msra.mxu0 %v1058
      %1526 = vmatprep.subr.bf16.mxu0 %v1049
      %1527 = vmatpush1.bf16.msra.mxu0 %v1048
      %1528 = vmatprep.subr.bf16.mxu0 %v1039
      %1529 = vmatpush1.bf16.msra.mxu0 %v1038
      %1530 = vmatprep.subr.bf16.mxu0 %v1029
      %1531 = vmatpush1.bf16.msra.mxu0 %v1028
      %1532 = vmatprep.subr.bf16.mxu0 %v1179
      %1533 = vmatpush2.bf16.msra.mxu0 %v1178
      %1534 = vmatprep.subr.bf16.mxu0 %v1169
      %1535 = vmatpush2.bf16.msra.mxu0 %v1168
      %1536 = vmatprep.subr.bf16.mxu0 %v1159
      %1537 = vmatpush2.bf16.msra.mxu0 %v1158
      %1538 = vmatprep.subr.bf16.mxu0 %v1149
      %1539 = vmatpush2.bf16.msra.mxu0 %v1148
      %1540 = vmatprep.subr.bf16.mxu0 %v1139
      %1541 = vmatpush2.bf16.msra.mxu0 %v1138
      %1542 = vmatprep.subr.bf16.mxu0 %v1129
      %1543 = vmatpush2.bf16.msra.mxu0 %v1128
      %1544 = vmatprep.subr.bf16.mxu0 %v1119
      %1545 = vmatpush2.bf16.msra.mxu0 %v1118
      %1546 = vmatprep.subr.bf16.mxu0 %v1109
      %1547 = vmatpush2.bf16.msra.mxu0 %v1108
      %1548 = vmatprep.mubr.bf16.mxu0 %v422
      %1549 = vmatmul.mubr.bf16.gmra.mxu0 %v421
      %v1550 = vpop.f32.mrf.mxu0
      %v1551 = vadd.f32 0.0, %v1550
      %v1552 = vpop.f32.mrf.mxu0
      %v1553 = vadd.f32 0.0, %v1552
      %v1554 = vpop.f32.mrf.mxu0
      %v1555 = vadd.f32 0.0, %v1554
      %v1556 = vpop.f32.mrf.mxu0
      %v1557 = vadd.f32 0.0, %v1556
      %1558 = vdwg.mxu0
      %1559 = vmatprep.subr.bf16.mxu0 0
      %1560 = vmatpush1.bf16.msra.mxu0 0
      %1561 = vmatprep.subr.bf16.mxu0 0
      %1562 = vmatpush1.bf16.msra.mxu0 0
      %1563 = vmatprep.subr.bf16.mxu0 0
      %1564 = vmatpush1.bf16.msra.mxu0 0
      %1565 = vmatprep.subr.bf16.mxu0 0
      %1566 = vmatpush1.bf16.msra.mxu0 0
      %1567 = vmatprep.subr.bf16.mxu0 %v1219
      %1568 = vmatpush1.bf16.msra.mxu0 %v1218
      %1569 = vmatprep.subr.bf16.mxu0 %v1209
      %1570 = vmatpush1.bf16.msra.mxu0 %v1208
      %1571 = vmatprep.subr.bf16.mxu0 %v1199
      %1572 = vmatpush1.bf16.msra.mxu0 %v1198
      %1573 = vmatprep.subr.bf16.mxu0 %v1189
      %1574 = vmatpush1.bf16.msra.mxu0 %v1188
      %1575 = vmatprep.subr.bf16.mxu0 0
      %1576 = vmatpush2.bf16.msra.mxu0 0
      %1577 = vmatprep.subr.bf16.mxu0 0
      %1578 = vmatpush2.bf16.msra.mxu0 0
      %1579 = vmatprep.subr.bf16.mxu0 0
      %1580 = vmatpush2.bf16.msra.mxu0 0
      %1581 = vmatprep.subr.bf16.mxu0 0
      %1582 = vmatpush2.bf16.msra.mxu0 0
      %1583 = vmatprep.subr.bf16.mxu0 0
      %1584 = vmatpush2.bf16.msra.mxu0 0
      %1585 = vmatprep.subr.bf16.mxu0 0
      %1586 = vmatpush2.bf16.msra.mxu0 0
      %1587 = vmatprep.subr.bf16.mxu0 0
      %1588 = vmatpush2.bf16.msra.mxu0 0
      %1589 = vmatprep.subr.bf16.mxu0 0
      %1590 = vmatpush2.bf16.msra.mxu0 0
      %1591 = vmatprep.mubr.bf16.mxu0 0
      %1592 = vmatmul.mubr.bf16.gmra.mxu0 %v1428
      %v1593 = vpop.f32.mrf.mxu0
      %v1594 = vadd.f32 %v1551, %v1593
      %v1595 = vpop.f32.mrf.mxu0
      %v1596 = vadd.f32 %v1553, %v1595
      %v1597 = vpop.f32.mrf.mxu0
      %v1598 = vadd.f32 %v1555, %v1597
      %v1599 = vpop.f32.mrf.mxu0
      %v1600 = vadd.f32 %v1557, %v1599
      %1601 = vdwg.mxu0
      %1602 = vmatprep.subr.bf16.mxu0 %v1101
      %1603 = vmatpush1.bf16.msra.mxu0 %v1100
      %1604 = vmatprep.subr.bf16.mxu0 %v1091
      %1605 = vmatpush1.bf16.msra.mxu0 %v1090
      %1606 = vmatprep.subr.bf16.mxu0 %v1081
      %1607 = vmatpush1.bf16.msra.mxu0 %v1080
      %1608 = vmatprep.subr.bf16.mxu0 %v1071
      %1609 = vmatpush1.bf16.msra.mxu0 %v1070
      %1610 = vmatprep.subr.bf16.mxu0 %v1061
      %1611 = vmatpush1.bf16.msra.mxu0 %v1060
      %1612 = vmatprep.subr.bf16.mxu0 %v1051
      %1613 = vmatpush1.bf16.msra.mxu0 %v1050
      %1614 = vmatprep.subr.bf16.mxu0 %v1041
      %1615 = vmatpush1.bf16.msra.mxu0 %v1040
      %1616 = vmatprep.subr.bf16.mxu0 %v1031
      %1617 = vmatpush1.bf16.msra.mxu0 %v1030
      %1618 = vmatprep.subr.bf16.mxu0 %v1181
      %1619 = vmatpush2.bf16.msra.mxu0 %v1180
      %1620 = vmatprep.subr.bf16.mxu0 %v1171
      %1621 = vmatpush2.bf16.msra.mxu0 %v1170
      %1622 = vmatprep.subr.bf16.mxu0 %v1161
      %1623 = vmatpush2.bf16.msra.mxu0 %v1160
      %1624 = vmatprep.subr.bf16.mxu0 %v1151
      %1625 = vmatpush2.bf16.msra.mxu0 %v1150
      %1626 = vmatprep.subr.bf16.mxu0 %v1141
      %1627 = vmatpush2.bf16.msra.mxu0 %v1140
      %1628 = vmatprep.subr.bf16.mxu0 %v1131
      %1629 = vmatpush2.bf16.msra.mxu0 %v1130
      %1630 = vmatprep.subr.bf16.mxu0 %v1121
      %1631 = vmatpush2.bf16.msra.mxu0 %v1120
      %1632 = vmatprep.subr.bf16.mxu0 %v1111
      %1633 = vmatpush2.bf16.msra.mxu0 %v1110
      %1634 = vmatprep.mubr.bf16.mxu0 %v422
      %1635 = vmatmul.mubr.bf16.gmra.mxu0 %v421
      %v1636 = vpop.f32.mrf.mxu0
      %v1637 = vadd.f32 0.0, %v1636
      %v1638 = vpop.f32.mrf.mxu0
      %v1639 = vadd.f32 0.0, %v1638
      %v1640 = vpop.f32.mrf.mxu0
      %v1641 = vadd.f32 0.0, %v1640
      %v1642 = vpop.f32.mrf.mxu0
      %v1643 = vadd.f32 0.0, %v1642
      %1644 = vdwg.mxu0
      %1645 = vmatprep.subr.bf16.mxu0 0
      %1646 = vmatpush1.bf16.msra.mxu0 0
      %1647 = vmatprep.subr.bf16.mxu0 0
      %1648 = vmatpush1.bf16.msra.mxu0 0
      %1649 = vmatprep.subr.bf16.mxu0 0
      %1650 = vmatpush1.bf16.msra.mxu0 0
      %1651 = vmatprep.subr.bf16.mxu0 0
      %1652 = vmatpush1.bf16.msra.mxu0 0
      %1653 = vmatprep.subr.bf16.mxu0 %v1221
      %1654 = vmatpush1.bf16.msra.mxu0 %v1220
      %1655 = vmatprep.subr.bf16.mxu0 %v1211
      %1656 = vmatpush1.bf16.msra.mxu0 %v1210
      %1657 = vmatprep.subr.bf16.mxu0 %v1201
      %1658 = vmatpush1.bf16.msra.mxu0 %v1200
      %1659 = vmatprep.subr.bf16.mxu0 %v1191
      %1660 = vmatpush1.bf16.msra.mxu0 %v1190
      %1661 = vmatprep.subr.bf16.mxu0 0
      %1662 = vmatpush2.bf16.msra.mxu0 0
      %1663 = vmatprep.subr.bf16.mxu0 0
      %1664 = vmatpush2.bf16.msra.mxu0 0
      %1665 = vmatprep.subr.bf16.mxu0 0
      %1666 = vmatpush2.bf16.msra.mxu0 0
      %1667 = vmatprep.subr.bf16.mxu0 0
      %1668 = vmatpush2.bf16.msra.mxu0 0
      %1669 = vmatprep.subr.bf16.mxu0 0
      %1670 = vmatpush2.bf16.msra.mxu0 0
      %1671 = vmatprep.subr.bf16.mxu0 0
      %1672 = vmatpush2.bf16.msra.mxu0 0
      %1673 = vmatprep.subr.bf16.mxu0 0
      %1674 = vmatpush2.bf16.msra.mxu0 0
      %1675 = vmatprep.subr.bf16.mxu0 0
      %1676 = vmatpush2.bf16.msra.mxu0 0
      %1677 = vmatprep.mubr.bf16.mxu0 0
      %1678 = vmatmul.mubr.bf16.gmra.mxu0 %v1428
      %v1679 = vpop.f32.mrf.mxu0
      %v1680 = vadd.f32 %v1637, %v1679
      %v1681 = vpop.f32.mrf.mxu0
      %v1682 = vadd.f32 %v1639, %v1681
      %v1683 = vpop.f32.mrf.mxu0
      %v1684 = vadd.f32 %v1641, %v1683
      %v1685 = vpop.f32.mrf.mxu0
      %v1686 = vadd.f32 %v1643, %v1685
      %1687 = vdwg.mxu0
      %1688 = vmatprep.subr.bf16.mxu0 %v1103
      %1689 = vmatpush1.bf16.msra.mxu0 %v1102
      %1690 = vmatprep.subr.bf16.mxu0 %v1093
      %1691 = vmatpush1.bf16.msra.mxu0 %v1092
      %1692 = vmatprep.subr.bf16.mxu0 %v1083
      %1693 = vmatpush1.bf16.msra.mxu0 %v1082
      %1694 = vmatprep.subr.bf16.mxu0 %v1073
      %1695 = vmatpush1.bf16.msra.mxu0 %v1072
      %1696 = vmatprep.subr.bf16.mxu0 %v1063
      %1697 = vmatpush1.bf16.msra.mxu0 %v1062
      %1698 = vmatprep.subr.bf16.mxu0 %v1053
      %1699 = vmatpush1.bf16.msra.mxu0 %v1052
      %1700 = vmatprep.subr.bf16.mxu0 %v1043
      %1701 = vmatpush1.bf16.msra.mxu0 %v1042
      %1702 = vmatprep.subr.bf16.mxu0 %v1033
      %1703 = vmatpush1.bf16.msra.mxu0 %v1032
      %1704 = vmatprep.subr.bf16.mxu0 %v1183
      %1705 = vmatpush2.bf16.msra.mxu0 %v1182
      %1706 = vmatprep.subr.bf16.mxu0 %v1173
      %1707 = vmatpush2.bf16.msra.mxu0 %v1172
      %1708 = vmatprep.subr.bf16.mxu0 %v1163
      %1709 = vmatpush2.bf16.msra.mxu0 %v1162
      %1710 = vmatprep.subr.bf16.mxu0 %v1153
      %1711 = vmatpush2.bf16.msra.mxu0 %v1152
      %1712 = vmatprep.subr.bf16.mxu0 %v1143
      %1713 = vmatpush2.bf16.msra.mxu0 %v1142
      %1714 = vmatprep.subr.bf16.mxu0 %v1133
      %1715 = vmatpush2.bf16.msra.mxu0 %v1132
      %1716 = vmatprep.subr.bf16.mxu0 %v1123
      %1717 = vmatpush2.bf16.msra.mxu0 %v1122
      %1718 = vmatprep.subr.bf16.mxu0 %v1113
      %1719 = vmatpush2.bf16.msra.mxu0 %v1112
      %1720 = vmatprep.mubr.bf16.mxu0 %v422
      %1721 = vmatmul.mubr.bf16.gmra.mxu0 %v421
      %v1722 = vpop.f32.mrf.mxu0
      %v1723 = vadd.f32 0.0, %v1722
      %v1724 = vpop.f32.mrf.mxu0
      %v1725 = vadd.f32 0.0, %v1724
      %v1726 = vpop.f32.mrf.mxu0
      %v1727 = vadd.f32 0.0, %v1726
      %v1728 = vpop.f32.mrf.mxu0
      %v1729 = vadd.f32 0.0, %v1728
      %1730 = vdwg.mxu0
      %1731 = vmatprep.subr.bf16.mxu0 0
      %1732 = vmatpush1.bf16.msra.mxu0 0
      %1733 = vmatprep.subr.bf16.mxu0 0
      %1734 = vmatpush1.bf16.msra.mxu0 0
      %1735 = vmatprep.subr.bf16.mxu0 0
      %1736 = vmatpush1.bf16.msra.mxu0 0
      %1737 = vmatprep.subr.bf16.mxu0 0
      %1738 = vmatpush1.bf16.msra.mxu0 0
      %1739 = vmatprep.subr.bf16.mxu0 %v1223
      %1740 = vmatpush1.bf16.msra.mxu0 %v1222
      %1741 = vmatprep.subr.bf16.mxu0 %v1213
      %1742 = vmatpush1.bf16.msra.mxu0 %v1212
      %1743 = vmatprep.subr.bf16.mxu0 %v1203
      %1744 = vmatpush1.bf16.msra.mxu0 %v1202
      %1745 = vmatprep.subr.bf16.mxu0 %v1193
      %1746 = vmatpush1.bf16.msra.mxu0 %v1192
      %1747 = vmatprep.subr.bf16.mxu0 0
      %1748 = vmatpush2.bf16.msra.mxu0 0
      %1749 = vmatprep.subr.bf16.mxu0 0
      %1750 = vmatpush2.bf16.msra.mxu0 0
      %1751 = vmatprep.subr.bf16.mxu0 0
      %1752 = vmatpush2.bf16.msra.mxu0 0
      %1753 = vmatprep.subr.bf16.mxu0 0
      %1754 = vmatpush2.bf16.msra.mxu0 0
      %1755 = vmatprep.subr.bf16.mxu0 0
      %1756 = vmatpush2.bf16.msra.mxu0 0
      %1757 = vmatprep.subr.bf16.mxu0 0
      %1758 = vmatpush2.bf16.msra.mxu0 0
      %1759 = vmatprep.subr.bf16.mxu0 0
      %1760 = vmatpush2.bf16.msra.mxu0 0
      %1761 = vmatprep.subr.bf16.mxu0 0
      %1762 = vmatpush2.bf16.msra.mxu0 0
      %1763 = vmatprep.mubr.bf16.mxu0 0
      %1764 = vmatmul.mubr.bf16.gmra.mxu0 %v1428
      %v1765 = vpop.f32.mrf.mxu0
      %v1766 = vadd.f32 %v1723, %v1765
      %v1767 = vpop.f32.mrf.mxu0
      %v1768 = vadd.f32 %v1725, %v1767
      %v1769 = vpop.f32.mrf.mxu0
      %v1770 = vadd.f32 %v1727, %v1769
      %v1771 = vpop.f32.mrf.mxu0
      %v1772 = vadd.f32 %v1729, %v1771
      %1773 = vdwg.mxu0
      %1774 = vmatprep.subr.bf16.mxu0 %v1105
      %1775 = vmatpush1.bf16.msra.mxu0 %v1104
      %1776 = vmatprep.subr.bf16.mxu0 %v1095
      %1777 = vmatpush1.bf16.msra.mxu0 %v1094
      %1778 = vmatprep.subr.bf16.mxu0 %v1085
      %1779 = vmatpush1.bf16.msra.mxu0 %v1084
      %1780 = vmatprep.subr.bf16.mxu0 %v1075
      %1781 = vmatpush1.bf16.msra.mxu0 %v1074
      %1782 = vmatprep.subr.bf16.mxu0 %v1065
      %1783 = vmatpush1.bf16.msra.mxu0 %v1064
      %1784 = vmatprep.subr.bf16.mxu0 %v1055
      %1785 = vmatpush1.bf16.msra.mxu0 %v1054
      %1786 = vmatprep.subr.bf16.mxu0 %v1045
      %1787 = vmatpush1.bf16.msra.mxu0 %v1044
      %1788 = vmatprep.subr.bf16.mxu0 %v1035
      %1789 = vmatpush1.bf16.msra.mxu0 %v1034
      %1790 = vmatprep.subr.bf16.mxu0 %v1185
      %1791 = vmatpush2.bf16.msra.mxu0 %v1184
      %1792 = vmatprep.subr.bf16.mxu0 %v1175
      %1793 = vmatpush2.bf16.msra.mxu0 %v1174
      %1794 = vmatprep.subr.bf16.mxu0 %v1165
      %1795 = vmatpush2.bf16.msra.mxu0 %v1164
      %1796 = vmatprep.subr.bf16.mxu0 %v1155
      %1797 = vmatpush2.bf16.msra.mxu0 %v1154
      %1798 = vmatprep.subr.bf16.mxu0 %v1145
      %1799 = vmatpush2.bf16.msra.mxu0 %v1144
      %1800 = vmatprep.subr.bf16.mxu0 %v1135
      %1801 = vmatpush2.bf16.msra.mxu0 %v1134
      %1802 = vmatprep.subr.bf16.mxu0 %v1125
      %1803 = vmatpush2.bf16.msra.mxu0 %v1124
      %1804 = vmatprep.subr.bf16.mxu0 %v1115
      %1805 = vmatpush2.bf16.msra.mxu0 %v1114
      %1806 = vmatprep.mubr.bf16.mxu0 %v422
      %1807 = vmatmul.mubr.bf16.gmra.mxu0 %v421
      %v1808 = vpop.f32.mrf.mxu0
      %v1809 = vadd.f32 0.0, %v1808
      %v1810 = vpop.f32.mrf.mxu0
      %v1811 = vadd.f32 0.0, %v1810
      %v1812 = vpop.f32.mrf.mxu0
      %v1813 = vadd.f32 0.0, %v1812
      %v1814 = vpop.f32.mrf.mxu0
      %v1815 = vadd.f32 0.0, %v1814
      %1816 = vdwg.mxu0
      %1817 = vmatprep.subr.bf16.mxu0 0
      %1818 = vmatpush1.bf16.msra.mxu0 0
      %1819 = vmatprep.subr.bf16.mxu0 0
      %1820 = vmatpush1.bf16.msra.mxu0 0
      %1821 = vmatprep.subr.bf16.mxu0 0
      %1822 = vmatpush1.bf16.msra.mxu0 0
      %1823 = vmatprep.subr.bf16.mxu0 0
      %1824 = vmatpush1.bf16.msra.mxu0 0
      %1825 = vmatprep.subr.bf16.mxu0 %v1225
      %1826 = vmatpush1.bf16.msra.mxu0 %v1224
      %1827 = vmatprep.subr.bf16.mxu0 %v1215
      %1828 = vmatpush1.bf16.msra.mxu0 %v1214
      %1829 = vmatprep.subr.bf16.mxu0 %v1205
      %1830 = vmatpush1.bf16.msra.mxu0 %v1204
      %1831 = vmatprep.subr.bf16.mxu0 %v1195
      %1832 = vmatpush1.bf16.msra.mxu0 %v1194
      %1833 = vmatprep.subr.bf16.mxu0 0
      %1834 = vmatpush2.bf16.msra.mxu0 0
      %1835 = vmatprep.subr.bf16.mxu0 0
      %1836 = vmatpush2.bf16.msra.mxu0 0
      %1837 = vmatprep.subr.bf16.mxu0 0
      %1838 = vmatpush2.bf16.msra.mxu0 0
      %1839 = vmatprep.subr.bf16.mxu0 0
      %1840 = vmatpush2.bf16.msra.mxu0 0
      %1841 = vmatprep.subr.bf16.mxu0 0
      %1842 = vmatpush2.bf16.msra.mxu0 0
      %1843 = vmatprep.subr.bf16.mxu0 0
      %1844 = vmatpush2.bf16.msra.mxu0 0
      %1845 = vmatprep.subr.bf16.mxu0 0
      %1846 = vmatpush2.bf16.msra.mxu0 0
      %1847 = vmatprep.subr.bf16.mxu0 0
      %1848 = vmatpush2.bf16.msra.mxu0 0
      %1849 = vmatprep.mubr.bf16.mxu0 0
      %1850 = vmatmul.mubr.bf16.gmra.mxu0 %v1428
      %v1851 = vpop.f32.mrf.mxu0
      %v1852 = vadd.f32 %v1809, %v1851
      %v1853 = vpop.f32.mrf.mxu0
      %v1854 = vadd.f32 %v1811, %v1853
      %v1855 = vpop.f32.mrf.mxu0
      %v1856 = vadd.f32 %v1813, %v1855
      %v1857 = vpop.f32.mrf.mxu0
      %v1858 = vadd.f32 %v1815, %v1857
      %1859 = vdwg.mxu0
      %v1860 = vld [vmem:[%s2] sm:$0xff]
      %v1861 = vld [vmem:[%s2 + $0x8] sm:$0x3]
      %v1864 = vlaneseq
      %v1865 = vshrl.u32 %v1864, 7
      %v1866 = vsub.s32 0, %v1865
      %v1867 = vrot.slane %v1860, %v1866
      %v1868 = vlaneseq
      %v1869 = vshrl.u32 %v1868, 7
      %v1870 = vsub.s32 1, %v1869
      %v1871 = vrot.slane %v1860, %v1870
      %v1872 = vlaneseq
      %v1873 = vshrl.u32 %v1872, 7
      %v1874 = vsub.s32 2, %v1873
      %v1875 = vrot.slane %v1860, %v1874
      %v1876 = vlaneseq
      %v1877 = vshrl.u32 %v1876, 7
      %v1878 = vsub.s32 3, %v1877
      %v1879 = vrot.slane %v1860, %v1878
      %v1880 = vlaneseq
      %v1881 = vshrl.u32 %v1880, 7
      %v1882 = vsub.s32 4, %v1881
      %v1883 = vrot.slane %v1860, %v1882
      %v1884 = vlaneseq
      %v1885 = vshrl.u32 %v1884, 7
      %v1886 = vsub.s32 5, %v1885
      %v1887 = vrot.slane %v1860, %v1886
      %v1888 = vlaneseq
      %v1889 = vshrl.u32 %v1888, 7
      %v1890 = vsub.s32 6, %v1889
      %v1891 = vrot.slane %v1860, %v1890
      %v1892 = vlaneseq
      %v1893 = vshrl.u32 %v1892, 7
      %v1894 = vsub.s32 7, %v1893
      %v1895 = vrot.slane %v1860, %v1894
      %v1896 = vlaneseq
      %v1897 = vshrl.u32 %v1896, 7
      %v1898 = vsub.s32 0, %v1897
      %v1899 = vrot.slane %v1861, %v1898
      %v1900 = vlaneseq
      %v1901 = vshrl.u32 %v1900, 7
      %v1902 = vsub.s32 1, %v1901
      %v1903 = vrot.slane %v1861, %v1902
      %v1914 = vmul.f32 %v1508, %v1867
      %v1915 = vmul.f32 %v1510, %v1871
      %v1916 = vmul.f32 %v1594, %v1875
      %v1917 = vmul.f32 %v1596, %v1879
      %v1918 = vmul.f32 %v1680, %v1883
      %v1919 = vmul.f32 %v1682, %v1887
      %v1920 = vmul.f32 %v1766, %v1891
      %v1921 = vmul.f32 %v1768, %v1895
      %v1922 = vmul.f32 %v1852, %v1899
      %v1923 = vmul.f32 %v1854, %v1903
      %v1924 = vmul.f32 %v1512, %v1867
      %v1925 = vmul.f32 %v1514, %v1871
      %v1926 = vmul.f32 %v1598, %v1875
      %v1927 = vmul.f32 %v1600, %v1879
      %v1928 = vmul.f32 %v1684, %v1883
      %v1929 = vmul.f32 %v1686, %v1887
      %v1930 = vmul.f32 %v1770, %v1891
      %v1931 = vmul.f32 %v1772, %v1895
      %v1932 = vmul.f32 %v1856, %v1899
      %v1933 = vmul.f32 %v1858, %v1903
      %v1934 = vld [vmem:[%s3] sm:$0xff]
      %v1935 = vld [vmem:[%s3 + $0x8] sm:$0x3]
      %v1938 = vlaneseq
      %v1939 = vshrl.u32 %v1938, 7
      %v1940 = vsub.s32 0, %v1939
      %v1941 = vrot.slane %v1934, %v1940
      %v1942 = vlaneseq
      %v1943 = vshrl.u32 %v1942, 7
      %v1944 = vsub.s32 1, %v1943
      %v1945 = vrot.slane %v1934, %v1944
      %v1946 = vlaneseq
      %v1947 = vshrl.u32 %v1946, 7
      %v1948 = vsub.s32 2, %v1947
      %v1949 = vrot.slane %v1934, %v1948
      %v1950 = vlaneseq
      %v1951 = vshrl.u32 %v1950, 7
      %v1952 = vsub.s32 3, %v1951
      %v1953 = vrot.slane %v1934, %v1952
      %v1954 = vlaneseq
      %v1955 = vshrl.u32 %v1954, 7
      %v1956 = vsub.s32 4, %v1955
      %v1957 = vrot.slane %v1934, %v1956
      %v1958 = vlaneseq
      %v1959 = vshrl.u32 %v1958, 7
      %v1960 = vsub.s32 5, %v1959
      %v1961 = vrot.slane %v1934, %v1960
      %v1962 = vlaneseq
      %v1963 = vshrl.u32 %v1962, 7
      %v1964 = vsub.s32 6, %v1963
      %v1965 = vrot.slane %v1934, %v1964
      %v1966 = vlaneseq
      %v1967 = vshrl.u32 %v1966, 7
      %v1968 = vsub.s32 7, %v1967
      %v1969 = vrot.slane %v1934, %v1968
      %v1970 = vlaneseq
      %v1971 = vshrl.u32 %v1970, 7
      %v1972 = vsub.s32 0, %v1971
      %v1973 = vrot.slane %v1935, %v1972
      %v1974 = vlaneseq
      %v1975 = vshrl.u32 %v1974, 7
      %v1976 = vsub.s32 1, %v1975
      %v1977 = vrot.slane %v1935, %v1976
      %v1988 = vadd.f32 %v1914, %v1941
      %v1989 = vadd.f32 %v1915, %v1945
      %v1990 = vadd.f32 %v1916, %v1949
      %v1991 = vadd.f32 %v1917, %v1953
      %v1992 = vadd.f32 %v1918, %v1957
      %v1993 = vadd.f32 %v1919, %v1961
      %v1994 = vadd.f32 %v1920, %v1965
      %v1995 = vadd.f32 %v1921, %v1969
      %v1996 = vadd.f32 %v1922, %v1973
      %v1997 = vadd.f32 %v1923, %v1977
      %v1998 = vadd.f32 %v1924, %v1941
      %v1999 = vadd.f32 %v1925, %v1945
      %v2000 = vadd.f32 %v1926, %v1949
      %v2001 = vadd.f32 %v1927, %v1953
      %v2002 = vadd.f32 %v1928, %v1957
      %v2003 = vadd.f32 %v1929, %v1961
      %v2004 = vadd.f32 %v1930, %v1965
      %v2005 = vadd.f32 %v1931, %v1969
      %v2006 = vadd.f32 %v1932, %v1973
      %v2007 = vadd.f32 %v1933, %v1977
      %v2008 = vmax.f32 %v1988, 0.0
      %v2009 = vmax.f32 %v1989, 0.0
      %v2010 = vmax.f32 %v1990, 0.0
      %v2011 = vmax.f32 %v1991, 0.0
      %v2012 = vmax.f32 %v1992, 0.0
      %v2013 = vmax.f32 %v1993, 0.0
      %v2014 = vmax.f32 %v1994, 0.0
      %v2015 = vmax.f32 %v1995, 0.0
      %v2016 = vmax.f32 %v1996, 0.0
      %v2017 = vmax.f32 %v1997, 0.0
      %v2018 = vmax.f32 %v1998, 0.0
      %v2019 = vmax.f32 %v1999, 0.0
      %v2020 = vmax.f32 %v2000, 0.0
      %v2021 = vmax.f32 %v2001, 0.0
      %v2022 = vmax.f32 %v2002, 0.0
      %v2023 = vmax.f32 %v2003, 0.0
      %v2024 = vmax.f32 %v2004, 0.0
      %v2025 = vmax.f32 %v2005, 0.0
      %v2026 = vmax.f32 %v2006, 0.0
      %v2027 = vmax.f32 %v2007, 0.0
      %v2028 = vmin.f32 %v2008, 6.0
      %v2029 = vmin.f32 %v2009, 6.0
      %v2030 = vmin.f32 %v2010, 6.0
      %v2031 = vmin.f32 %v2011, 6.0
      %v2032 = vmin.f32 %v2012, 6.0
      %v2033 = vmin.f32 %v2013, 6.0
      %v2034 = vmin.f32 %v2014, 6.0
      %v2035 = vmin.f32 %v2015, 6.0
      %v2036 = vmin.f32 %v2016, 6.0
      %v2037 = vmin.f32 %v2017, 6.0
      %v2038 = vmin.f32 %v2018, 6.0
      %v2039 = vmin.f32 %v2019, 6.0
      %v2040 = vmin.f32 %v2020, 6.0
      %v2041 = vmin.f32 %v2021, 6.0
      %v2042 = vmin.f32 %v2022, 6.0
      %v2043 = vmin.f32 %v2023, 6.0
      %v2044 = vmin.f32 %v2024, 6.0
      %v2045 = vmin.f32 %v2025, 6.0
      %v2046 = vmin.f32 %v2026, 6.0
      %v2047 = vmin.f32 %v2027, 6.0
      %v2048 = vpack.c.bf16 %v2038, %v2028
      %v2049 = vpack.c.bf16 %v2039, %v2029
      %v2050 = vpack.c.bf16 %v2040, %v2030
      %v2051 = vpack.c.bf16 %v2041, %v2031
      %v2052 = vpack.c.bf16 %v2042, %v2032
      %v2053 = vpack.c.bf16 %v2043, %v2033
      %v2054 = vpack.c.bf16 %v2044, %v2034
      %v2055 = vpack.c.bf16 %v2045, %v2035
      %v2056 = vpack.c.bf16 %v2046, %v2036
      %v2057 = vpack.c.bf16 %v2047, %v2037
      %v2068 = vunpack.c.l.b16 %v2048
      %v2069 = vunpack.c.l.b16 %v2049
      %v2070 = vunpack.c.l.b16 %v2050
      %v2071 = vunpack.c.l.b16 %v2051
      %v2072 = vunpack.c.l.b16 %v2052
      %v2073 = vunpack.c.l.b16 %v2053
      %v2074 = vunpack.c.l.b16 %v2054
      %v2075 = vunpack.c.l.b16 %v2055
      %v2076 = vunpack.c.l.b16 %v2056
      %v2077 = vunpack.c.l.b16 %v2057
      %v2078 = vunpack.c.h.b16 %v2048
      %v2079 = vunpack.c.h.b16 %v2049
      %v2080 = vunpack.c.h.b16 %v2050
      %v2081 = vunpack.c.h.b16 %v2051
      %v2082 = vunpack.c.h.b16 %v2052
      %v2083 = vunpack.c.h.b16 %v2053
      %v2084 = vunpack.c.h.b16 %v2054
      %v2085 = vunpack.c.h.b16 %v2055
      %v2086 = vunpack.c.h.b16 %v2056
      %v2087 = vunpack.c.h.b16 %v2057
      %v2088 = vpack.c.b16 %v2069, %v2068
      %v2089 = vpack.c.b16 %v2071, %v2070
      %v2090 = vpack.c.b16 %v2073, %v2072
      %v2091 = vpack.c.b16 %v2075, %v2074
      %v2092 = vpack.c.b16 %v2077, %v2076
      %v2093 = vpack.c.b16 %v2079, %v2078
      %v2094 = vpack.c.b16 %v2081, %v2080
      %v2095 = vpack.c.b16 %v2083, %v2082
      %v2096 = vpack.c.b16 %v2085, %v2084
      %v2097 = vpack.c.b16 %v2087, %v2086
      %2108 = vst [vmem:[%s204] sm:$0xff] %v2088
      %2109 = vst [vmem:[%s204 + $0x8] sm:$0xff] %v2089
      %2110 = vst [vmem:[%s204 + $0x10] sm:$0xff] %v2090
      %2111 = vst [vmem:[%s204 + $0x18] sm:$0xff] %v2091
      %2112 = vst [vmem:[%s204 + $0x20] sm:$0xff] %v2092
      %2113 = vst [vmem:[%s204 + $0x28] sm:$0xff] %v2093
      %2114 = vst [vmem:[%s204 + $0x30] sm:$0xff] %v2094
      %2115 = vst [vmem:[%s204 + $0x38] sm:$0xff] %v2095
      %2116 = vst [vmem:[%s204 + $0x40] sm:$0xff] %v2096
      %2117 = vst [vmem:[%s204 + $0x48] sm:$0xff] %v2097
      %s2118 = smul.u32 2, %s15
      %p2119 = scmp.lt.s32.totalorder %s2118, 3
      %s2120 = scalar_select %p2119, %s2118, 3
      %s2121 = smul.addr %s2120, 10
      %s2122 = smul.addr %s2121, 4
      %s2123 = scalar_lea.vmem %s4, %s2122
      // Predicated region
      $region37: #{mobilenetv2_forward.1} parent=35 // pred_check
        %p2124 = pneg %p122
      $region38: #{mobilenetv2_forward.1} parent=35 // pred_check_branch
        %2126 = sbr.rel (%p2124) target = $region40
      $region39: #{mobilenetv2_forward.1} parent=35 // pred_region
        %s2127 = smul.u32 2, %s15
      $region40: #{mobilenetv2_forward.1} parent=35 // pred_fallthru
        _
    $region36: #{mobilenetv2_forward.1} parent=5 // pred_fallthru
      _
    %p2128 = scmp.le.s32.totalorder 2, %s10
    // Predicated region
    $region41: #{mobilenetv2_forward.1} parent=5 // pred_check
      %p2129 = pneg %p2128
    $region42: #{mobilenetv2_forward.1} parent=5 // pred_check_branch
      %2131 = sbr.rel (%p2129) target = $region44
    $region43: #{mobilenetv2_forward.1} parent=5 // pred_region
      %s2132 = ssub.s32 %s10, 2
      // Predicated region
      $region45: #{mobilenetv2_forward.1} parent=43 // pred_check
        %p2133 = pneg %p128
      $region46: #{mobilenetv2_forward.1} parent=43 // pred_check_branch
        %2135 = sbr.rel (%p2133) target = $region48
      $region47: #{mobilenetv2_forward.1} parent=43 // pred_region
        %s2136 = smul.u32 2, %s16
        %p2137 = scmp.lt.s32.totalorder %s2136, 3
        %s2138 = scalar_select %p2137, %s2136, 3
        %s2139 = smul.addr %s2138, 10
        %s2140 = smul.addr %s2139, 4
        %s2141 = scalar_lea.vmem %s4, %s2140
      $region48: #{mobilenetv2_forward.1} parent=43 // pred_fallthru
        _
    $region44: #{mobilenetv2_forward.1} parent=5 // pred_fallthru
      _
  $region6: #{mobilenetv2_forward.1} parent=0 // loop_footer
    %s14 = sadd.s32 1, %s10
  $region7: #{mobilenetv2_forward.1} parent=0 // loop_footer_branch
    %9 = sbr.rel target = $region3
  $region8: #{mobilenetv2_forward.1} parent=0 // loop_exit
    _

</llo_original>
